<compile_context>
chip_gen: v6e
topology: v6e:2x2x1
jax: 0.10.0
libtpu: 0.0.40
codegen_flags: <defaults>
</compile_context>

<pallas_src>
import functools

import jax
import jax.numpy as jnp
from jax.experimental import pallas as pl
from jax.experimental.pallas import tpu as pltpu


def _round_up(n, m):
    return ((n + m - 1) // m) * m


def _to(v, dt):
    return v if v.dtype == dt else v.astype(dt)


def _mlp_kernel(x_ref, w1_ref, b1_ref, w2_ref, b2_ref, w3_ref, b3_ref,
                w4_ref, b4_ref, o_ref):
    # One batch tile: (bm, K) -> (bm, N_out), full 4-layer MLP fused.
    cd = w1_ref.dtype                      # compute dtype of the matmuls (f32 or bf16)

    x = _to(x_ref[...], cd)
    h = jnp.dot(x, w1_ref[...], preferred_element_type=jnp.float32) + b1_ref[...]
    h = jnp.maximum(h, 0.0)                # bias + ReLU always in f32 (v5e has no bf16 VPU)

    h = jnp.dot(_to(h, cd), w2_ref[...], preferred_element_type=jnp.float32) + b2_ref[...]
    h = jnp.maximum(h, 0.0)

    h = jnp.dot(_to(h, cd), w3_ref[...], preferred_element_type=jnp.float32) + b3_ref[...]
    h = jnp.maximum(h, 0.0)

    out = jnp.dot(_to(h, cd), w4_ref[...], preferred_element_type=jnp.float32) + b4_ref[...]
    o_ref[...] = out.astype(o_ref.dtype)


def _pick_bm(B):
    # Small batches: a single grid step over the whole (sublane-padded) batch.
    if B <= 256:
        return _round_up(max(B, 8), 8)
    # Large batches: 256-row tiles fill v6e/v7x's 256-wide MXU and give a grid
    # of length >= 2 so dimension_semantics=('parallel',) can use both v7x TCs.
    return 256


@functools.partial(jax.jit, static_argnames=("bm", "compute_dtype"))
def joint_encoder_forward(x, params, *, bm=None, compute_dtype=jnp.float32):
    """x: any shape whose trailing dims flatten to in_size (like torch .view(-1, in_size))."""
    (w1, b1), (w2, b2), (w3, b3), (w4, b4) = params
    in_size = w1.shape[0]
    out_size = w4.shape[1]                         # 2 * z_dim

    x2d = x.reshape(-1, in_size)                   # == x.view(-1, in_size)
    B = x2d.shape[0]
    out_dtype = jnp.float32

    # ---- dtype handling: weights (and x) in compute dtype, biases/accum in f32 ----
    cd = jnp.dtype(compute_dtype)
    w1, w2, w3, w4 = (w.astype(cd) for w in (w1, w2, w3, w4))
    b1, b2, b3, b4 = (b.astype(jnp.float32) for b in (b1, b2, b3, b4))
    x2d = _to(x2d, cd)

    # ---- lane-align feature dims (zero padding is numerically exact) ----
    K = _round_up(in_size, 128)                    # e.g. 63 -> 128: unmasked vld, clean MXU K
    N_out = _round_up(out_size, 128)               # e.g. 64 -> 128: lane-dense unmasked stores
    if K != in_size:
        x2d = jnp.pad(x2d, ((0, 0), (0, K - in_size)))
        w1 = jnp.pad(w1, ((0, K - in_size), (0, 0)))
    if N_out != out_size:
        w4 = jnp.pad(w4, ((0, 0), (0, N_out - out_size)))
        b4 = jnp.pad(b4, ((0, 0), (0, N_out - out_size)))

    # ---- batch tiling ----
    if bm is None:
        bm = _pick_bm(B)
    Bp = _round_up(B, bm)
    if Bp != B:
        x2d = jnp.pad(x2d, ((0, Bp - B), (0, 0)))

    grid = (Bp // bm,)

    # Weight / bias blocks: full arrays, same block for every grid step (VMEM resident).
    def full_block(arr):
        nd = arr.ndim
        return pl.BlockSpec(arr.shape, lambda i, _nd=nd: (0,) * _nd)

    out = pl.pallas_call(
        _mlp_kernel,
        out_shape=jax.ShapeDtypeStruct((Bp, N_out), out_dtype),
        grid_spec=pltpu.PrefetchScalarGridSpec(
            num_scalar_prefetch=0,
            grid=grid,
            in_specs=[
                pl.BlockSpec((bm, K), lambda i: (i, 0)),      # x batch tile
                full_block(w1), full_block(b1),
                full_block(w2), full_block(b2),
                full_block(w3), full_block(b3),
                full_block(w4), full_block(b4),
            ],
            out_specs=pl.BlockSpec((bm, N_out), lambda i: (i, 0)),
        ),
        compiler_params=pltpu.CompilerParams(
            dimension_semantics=("parallel",),                # batch tiles are independent
            vmem_limit_bytes=24 * 1024 * 1024,                # explicit headroom (safe on v7x 64 MiB)
        ),
    )(x2d, w1, b1, w2, b2, w3, b3, w4, b4)

    return out[:B, :out_size]


def init_joint_encoder_params(key, in_size, z_dim, dtype=jnp.float32):
    """Deterministic init matching PyTorch nn.Linear default:
    U(-1/sqrt(fan_in), 1/sqrt(fan_in)) for both weight and bias.
    Weights stored as (in_features, out_features)."""
    dims = [in_size, 512, 512, 512, 2 * z_dim]
    params = []
    for li in range(4):
        fan_in, fan_out = dims[li], dims[li + 1]
        key, kw, kb = jax.random.split(key, 3)
        bound = 1.0 / (fan_in ** 0.5)
        w = jax.random.uniform(kw, (fan_in, fan_out), dtype, -bound, bound)
        b = jax.random.uniform(kb, (1, fan_out), dtype, -bound, bound)
        params.append((w, b))
    return params


def joint_encoder_reference(x, params):
    """Pure-JAX reference for correctness checking."""
    (w1, b1), (w2, b2), (w3, b3), (w4, b4) = params
    h = x.reshape(-1, w1.shape[0])
    h = jnp.maximum(h @ w1 + b1, 0.0)
    h = jnp.maximum(h @ w2 + b2, 0.0)
    h = jnp.maximum(h @ w3 + b3, 0.0)
    return h @ w4 + b4


if __name__ == "__main__":
    key = jax.random.PRNGKey(0)

    # in_dim = (3, 21) hand keypoints -> in_size = 63 ; z_dim = 32 -> output = 64
    in_dim = (3, 21)
    in_size = int(in_dim[0] * in_dim[1])
    z_dim = 32
    batch = 16

    key, kx, kp = jax.random.split(key, 3)
    x = jax.random.normal(kx, (batch,) + in_dim, dtype=jnp.float32)
    params = init_joint_encoder_params(kp, in_size, z_dim)

    ref = joint_encoder_reference(x, params)

    # f32 path (exact): single grid step over the whole padded batch.
    out_f32 = jax.block_until_ready(joint_encoder_forward(x, params))
    assert out_f32.shape == (batch, 2 * z_dim), out_f32.shape
    assert jnp.allclose(out_f32, ref, atol=1e-4, rtol=1e-4), "f32 mismatch vs reference"

    # bf16-weight path (MXU-native, f32 accumulation): looser tolerance vs f32 ref.
    out_bf16 = jax.block_until_ready(
        joint_encoder_forward(x, params, compute_dtype=jnp.bfloat16))
    assert out_bf16.shape == (batch, 2 * z_dim), out_bf16.shape
    assert jnp.allclose(out_bf16, ref, atol=5e-2, rtol=5e-2), "bf16 mismatch vs reference"

    print("KERNEL_OK")
</pallas_src>

<mosaic_0001>
module attributes {stable_mosaic.version = 11 : i64} {
  func.func @_mlp_kernel(%arg0: i32, %arg1: memref<16x128xf32, #tpu.memory_space<vmem>>, %arg2: memref<128x512xf32, #tpu.memory_space<vmem>>, %arg3: memref<1x512xf32, #tpu.memory_space<vmem>>, %arg4: memref<512x512xf32, #tpu.memory_space<vmem>>, %arg5: memref<1x512xf32, #tpu.memory_space<vmem>>, %arg6: memref<512x512xf32, #tpu.memory_space<vmem>>, %arg7: memref<1x512xf32, #tpu.memory_space<vmem>>, %arg8: memref<512x128xf32, #tpu.memory_space<vmem>>, %arg9: memref<1x128xf32, #tpu.memory_space<vmem>>, %arg10: memref<16x128xf32, #tpu.memory_space<vmem>>) attributes {dimension_semantics = [#tpu.dimension_semantics<parallel>], iteration_bounds = array<i64: 1>, scalar_prefetch = 0 : i64, scratch_operands = 0 : i64, tpu.core_type = #tpu.core_type<tc>, window_params = [{transform_indices = @transform_0, window_bounds = array<i64: 16, 128>}, {pipeline_mode = #tpu.pipeline_mode<synchronous>, transform_indices = @transform_1, window_bounds = array<i64: 128, 512>}, {pipeline_mode = #tpu.pipeline_mode<synchronous>, transform_indices = @transform_2, window_bounds = array<i64: 1, 512>}, {pipeline_mode = #tpu.pipeline_mode<synchronous>, transform_indices = @transform_3, window_bounds = array<i64: 512, 512>}, {pipeline_mode = #tpu.pipeline_mode<synchronous>, transform_indices = @transform_4, window_bounds = array<i64: 1, 512>}, {pipeline_mode = #tpu.pipeline_mode<synchronous>, transform_indices = @transform_5, window_bounds = array<i64: 512, 512>}, {pipeline_mode = #tpu.pipeline_mode<synchronous>, transform_indices = @transform_6, window_bounds = array<i64: 1, 512>}, {pipeline_mode = #tpu.pipeline_mode<synchronous>, transform_indices = @transform_7, window_bounds = array<i64: 512, 128>}, {pipeline_mode = #tpu.pipeline_mode<synchronous>, transform_indices = @transform_8, window_bounds = array<i64: 1, 128>}, {transform_indices = @transform_9, window_bounds = array<i64: 16, 128>}]} {
    %c0 = arith.constant 0 : index
    %c0_0 = arith.constant 0 : index
    %0 = vector.load %arg1[%c0, %c0_0] : memref<16x128xf32, #tpu.memory_space<vmem>>, vector<16x128xf32>
    %c0_1 = arith.constant 0 : index
    %c0_2 = arith.constant 0 : index
    %1 = vector.load %arg2[%c0_1, %c0_2] : memref<128x512xf32, #tpu.memory_space<vmem>>, vector<128x512xf32>
    %cst = arith.constant dense<0.000000e+00> : vector<16x512xf32>
    %2 = tpu.matmul %0, %1, %cst {dimension_numbers = #tpu.dot_dimension_numbers<[1], [0], [0], [1], [0, 0, 1, 1], [], []>} : vector<16x128xf32>, vector<128x512xf32>, vector<16x512xf32> -> vector<16x512xf32>
    %c0_3 = arith.constant 0 : index
    %c0_4 = arith.constant 0 : index
    %3 = vector.load %arg3[%c0_3, %c0_4] : memref<1x512xf32, #tpu.memory_space<vmem>>, vector<1x512xf32>
    %4 = vector.broadcast %3 : vector<1x512xf32> to vector<16x512xf32>
    %5 = arith.addf %2, %4 : vector<16x512xf32>
    %cst_5 = arith.constant 0.000000e+00 : f32
    %6 = vector.broadcast %cst_5 : f32 to vector<16x512xf32>
    %7 = arith.maximumf %5, %6 : vector<16x512xf32>
    %c0_6 = arith.constant 0 : index
    %c0_7 = arith.constant 0 : index
    %8 = vector.load %arg4[%c0_6, %c0_7] : memref<512x512xf32, #tpu.memory_space<vmem>>, vector<512x512xf32>
    %cst_8 = arith.constant dense<0.000000e+00> : vector<16x512xf32>
    %9 = tpu.matmul %7, %8, %cst_8 {dimension_numbers = #tpu.dot_dimension_numbers<[1], [0], [0], [1], [0, 0, 1, 1], [], []>} : vector<16x512xf32>, vector<512x512xf32>, vector<16x512xf32> -> vector<16x512xf32>
    %c0_9 = arith.constant 0 : index
    %c0_10 = arith.constant 0 : index
    %10 = vector.load %arg5[%c0_9, %c0_10] : memref<1x512xf32, #tpu.memory_space<vmem>>, vector<1x512xf32>
    %11 = vector.broadcast %10 : vector<1x512xf32> to vector<16x512xf32>
    %12 = arith.addf %9, %11 : vector<16x512xf32>
    %cst_11 = arith.constant 0.000000e+00 : f32
    %13 = vector.broadcast %cst_11 : f32 to vector<16x512xf32>
    %14 = arith.maximumf %12, %13 : vector<16x512xf32>
    %c0_12 = arith.constant 0 : index
    %c0_13 = arith.constant 0 : index
    %15 = vector.load %arg6[%c0_12, %c0_13] : memref<512x512xf32, #tpu.memory_space<vmem>>, vector<512x512xf32>
    %cst_14 = arith.constant dense<0.000000e+00> : vector<16x512xf32>
    %16 = tpu.matmul %14, %15, %cst_14 {dimension_numbers = #tpu.dot_dimension_numbers<[1], [0], [0], [1], [0, 0, 1, 1], [], []>} : vector<16x512xf32>, vector<512x512xf32>, vector<16x512xf32> -> vector<16x512xf32>
    %c0_15 = arith.constant 0 : index
    %c0_16 = arith.constant 0 : index
    %17 = vector.load %arg7[%c0_15, %c0_16] : memref<1x512xf32, #tpu.memory_space<vmem>>, vector<1x512xf32>
    %18 = vector.broadcast %17 : vector<1x512xf32> to vector<16x512xf32>
    %19 = arith.addf %16, %18 : vector<16x512xf32>
    %cst_17 = arith.constant 0.000000e+00 : f32
    %20 = vector.broadcast %cst_17 : f32 to vector<16x512xf32>
    %21 = arith.maximumf %19, %20 : vector<16x512xf32>
    %c0_18 = arith.constant 0 : index
    %c0_19 = arith.constant 0 : index
    %22 = vector.load %arg8[%c0_18, %c0_19] : memref<512x128xf32, #tpu.memory_space<vmem>>, vector<512x128xf32>
    %cst_20 = arith.constant dense<0.000000e+00> : vector<16x128xf32>
    %23 = tpu.matmul %21, %22, %cst_20 {dimension_numbers = #tpu.dot_dimension_numbers<[1], [0], [0], [1], [0, 0, 1, 1], [], []>} : vector<16x512xf32>, vector<512x128xf32>, vector<16x128xf32> -> vector<16x128xf32>
    %c0_21 = arith.constant 0 : index
    %c0_22 = arith.constant 0 : index
    %24 = vector.load %arg9[%c0_21, %c0_22] : memref<1x128xf32, #tpu.memory_space<vmem>>, vector<1x128xf32>
    %25 = vector.broadcast %24 : vector<1x128xf32> to vector<16x128xf32>
    %26 = arith.addf %23, %25 : vector<16x128xf32>
    %c0_23 = arith.constant 0 : index
    %c0_24 = arith.constant 0 : index
    %27 = vector.load %arg10[%c0_23, %c0_24] : memref<16x128xf32, #tpu.memory_space<vmem>>, vector<16x128xf32>
    tpu.vector_store %arg10[%c0_23, %c0_24], %26 {strides = array<i32>} : memref<16x128xf32, #tpu.memory_space<vmem>>, vector<16x128xf32>,
    return
  }
  func.func @transform_0(%arg0: i32) -> (i32, i32) {
    %c0_i32 = arith.constant 0 : i32
    %c0_i32_0 = arith.constant 0 : i32
    return %arg0, %c0_i32 : i32, i32
  }
  func.func @transform_1(%arg0: i32) -> (i32, i32) {
    %c0_i32 = arith.constant 0 : i32
    %c0_i32_0 = arith.constant 0 : i32
    %c0_i32_1 = arith.constant 0 : i32
    return %c0_i32, %c0_i32_0 : i32, i32
  }
  func.func @transform_2(%arg0: i32) -> (i32, i32) {
    %c0_i32 = arith.constant 0 : i32
    %c0_i32_0 = arith.constant 0 : i32
    %c0_i32_1 = arith.constant 0 : i32
    return %c0_i32, %c0_i32_0 : i32, i32
  }
  func.func @transform_3(%arg0: i32) -> (i32, i32) {
    %c0_i32 = arith.constant 0 : i32
    %c0_i32_0 = arith.constant 0 : i32
    %c0_i32_1 = arith.constant 0 : i32
    return %c0_i32, %c0_i32_0 : i32, i32
  }
  func.func @transform_4(%arg0: i32) -> (i32, i32) {
    %c0_i32 = arith.constant 0 : i32
    %c0_i32_0 = arith.constant 0 : i32
    %c0_i32_1 = arith.constant 0 : i32
    return %c0_i32, %c0_i32_0 : i32, i32
  }
  func.func @transform_5(%arg0: i32) -> (i32, i32) {
    %c0_i32 = arith.constant 0 : i32
    %c0_i32_0 = arith.constant 0 : i32
    %c0_i32_1 = arith.constant 0 : i32
    return %c0_i32, %c0_i32_0 : i32, i32
  }
  func.func @transform_6(%arg0: i32) -> (i32, i32) {
    %c0_i32 = arith.constant 0 : i32
    %c0_i32_0 = arith.constant 0 : i32
    %c0_i32_1 = arith.constant 0 : i32
    return %c0_i32, %c0_i32_0 : i32, i32
  }
  func.func @transform_7(%arg0: i32) -> (i32, i32) {
    %c0_i32 = arith.constant 0 : i32
    %c0_i32_0 = arith.constant 0 : i32
    %c0_i32_1 = arith.constant 0 : i32
    return %c0_i32, %c0_i32_0 : i32, i32
  }
  func.func @transform_8(%arg0: i32) -> (i32, i32) {
    %c0_i32 = arith.constant 0 : i32
    %c0_i32_0 = arith.constant 0 : i32
    %c0_i32_1 = arith.constant 0 : i32
    return %c0_i32, %c0_i32_0 : i32, i32
  }
  func.func @transform_9(%arg0: i32) -> (i32, i32) {
    %c0_i32 = arith.constant 0 : i32
    %c0_i32_0 = arith.constant 0 : i32
    return %arg0, %c0_i32 : i32, i32
  }
}

</mosaic_0001>

<llo_original>
// kernel: joint_encoder_forward.1
$region0: #{joint_encoder_forward.1}
  #allocation0 [shape = 'u32[]', space=smem, size = 0x4, offset = 0x4, fixed_abs, tag = 'smem constant byte address 0x4 - core index']
  #allocation1 [shape = 'u32[144,128]{1,0:T(1,128)}', space=vmem, size = 0x12000, scoped, tag = 'internal scratch']
  %s0 = inlined_call_operand.vmem [shape: f32[16,128], index: 0, kind: input, shape index: {}]
  %s1 = inlined_call_operand.vmem [shape: f32[128,512], index: 1, kind: input, shape index: {}]
  %s2 = inlined_call_operand.vmem [shape: f32[1,512], index: 2, kind: input, shape index: {}]
  %s3 = inlined_call_operand.vmem [shape: f32[512,512], index: 3, kind: input, shape index: {}]
  %s4 = inlined_call_operand.vmem [shape: f32[1,512], index: 4, kind: input, shape index: {}]
  %s5 = inlined_call_operand.hbm [shape: f32[512,512], index: 5, kind: input, shape index: {}]
  %s6 = inlined_call_operand.vmem [shape: f32[1,512], index: 6, kind: input, shape index: {}]
  %s7 = inlined_call_operand.vmem [shape: f32[512,128], index: 7, kind: input, shape index: {}]
  %s8 = inlined_call_operand.vmem [shape: f32[1,128], index: 8, kind: input, shape index: {}]
  %s9 = inlined_call_operand.hbm [shape: f32[16,128], index: 9, kind: output, shape index: {}]
  %s10 = sld [smem:[#allocation0]]
  $region50: #{joint_encoder_forward.1} parent=0
    _
  %s12 = ssub.s32 1, %s10
  %s13 = scalar_select 0, %s12, %s10
  $region1: #{joint_encoder_forward.1} parent=0
    #allocation2 [shape = 'u8[1048576]{0}', space=vmem, size = 0x100000, scoped, tag = 'input window, operand 5, single buffered']
    #allocation3 [shape = 's32[1]{0}', space=sflag, size = 0x4, scoped, tag = 'scoped memory for joint_encoder_forward.1']
    #allocation4 [shape = 's32[1]{0}', space=sflag, size = 0x4, scoped, tag = 'scoped memory for joint_encoder_forward.1']
    #allocation5 [shape = 'u8[8192]{0}', space=vmem, size = 0x2000, scoped, tag = 'output window, operand 0, single buffered']
    %14 = vsyncpa [#allocation3], 0
    %15 = vsyncpa [#allocation4], 0
    // Predicated region
    $region2: #{joint_encoder_forward.1} parent=1 // pred_check
      _
    $region3: #{joint_encoder_forward.1} parent=1 // pred_check_branch
      %17 = sbr.rel (0) target = $region5
    $region4: #{joint_encoder_forward.1} parent=1 // pred_region
      _
    $region5: #{joint_encoder_forward.1} parent=1 // pred_fallthru
      _
    // Predicated region
    $region6: #{joint_encoder_forward.1} parent=1 // pred_check
      _
    $region7: #{joint_encoder_forward.1} parent=1 // pred_check_branch
      %19 = sbr.rel (0) target = $region9
    $region8: #{joint_encoder_forward.1} parent=1 // pred_region
      _
    $region9: #{joint_encoder_forward.1} parent=1 // pred_fallthru
      _
    // Predicated region
    $region10: #{joint_encoder_forward.1} parent=1 // pred_check
      _
    $region11: #{joint_encoder_forward.1} parent=1 // pred_check_branch
      %21 = sbr.rel (0) target = $region13
    $region12: #{joint_encoder_forward.1} parent=1 // pred_region
      _
    $region13: #{joint_encoder_forward.1} parent=1 // pred_fallthru
      _
    // Predicated region
    $region14: #{joint_encoder_forward.1} parent=1 // pred_check
      _
    $region15: #{joint_encoder_forward.1} parent=1 // pred_check_branch
      %23 = sbr.rel (0) target = $region17
    $region16: #{joint_encoder_forward.1} parent=1 // pred_region
      _
    $region17: #{joint_encoder_forward.1} parent=1 // pred_fallthru
      _
    // Predicated region
    $region18: #{joint_encoder_forward.1} parent=1 // pred_check
      _
    $region19: #{joint_encoder_forward.1} parent=1 // pred_check_branch
      %25 = sbr.rel (0) target = $region21
    $region20: #{joint_encoder_forward.1} parent=1 // pred_region
      _
    $region21: #{joint_encoder_forward.1} parent=1 // pred_fallthru
      _
    // Predicated region
    $region22: #{joint_encoder_forward.1} parent=1 // pred_check
      _
    $region23: #{joint_encoder_forward.1} parent=1 // pred_check_branch
      %27 = sbr.rel (0) target = $region25
    $region24: #{joint_encoder_forward.1} parent=1 // pred_region
      %s29 = ssub.s32 32768, 32768
      %30 = vsyncadd [#allocation3], %s29
      %s31 = sshll.u32 [#allocation2], 4
      %s32 = int_to_ptr.vmem [resolvable:$true] %s31
      %37 = dma.hbm_to_vmem [thread:$0]  %s5, 32768, %s32, [#allocation3], 512, 512, 32
    $region25: #{joint_encoder_forward.1} parent=1 // pred_fallthru
      _
    // Predicated region
    $region26: #{joint_encoder_forward.1} parent=1 // pred_check
      _
    $region27: #{joint_encoder_forward.1} parent=1 // pred_check_branch
      %39 = sbr.rel (0) target = $region29
    $region28: #{joint_encoder_forward.1} parent=1 // pred_region
      _
    $region29: #{joint_encoder_forward.1} parent=1 // pred_fallthru
      _
    // Predicated region
    $region30: #{joint_encoder_forward.1} parent=1 // pred_check
      _
    $region31: #{joint_encoder_forward.1} parent=1 // pred_check_branch
      %41 = sbr.rel (0) target = $region33
    $region32: #{joint_encoder_forward.1} parent=1 // pred_region
      _
    $region33: #{joint_encoder_forward.1} parent=1 // pred_fallthru
      _
    // Predicated region
    $region34: #{joint_encoder_forward.1} parent=1 // pred_check
      _
    $region35: #{joint_encoder_forward.1} parent=1 // pred_check_branch
      %43 = sbr.rel (0) target = $region37
    $region36: #{joint_encoder_forward.1} parent=1 // pred_region
      _
    $region37: #{joint_encoder_forward.1} parent=1 // pred_fallthru
      _
    // Predicated region
    $region38: #{joint_encoder_forward.1} parent=1 // pred_check
      _
    $region39: #{joint_encoder_forward.1} parent=1 // pred_check_branch
      %45 = sbr.rel (0) target = $region41
    $region40: #{joint_encoder_forward.1} parent=1 // pred_region
      %46 = dma.done [#allocation3], 32768
    $region41: #{joint_encoder_forward.1} parent=1 // pred_fallthru
      _
    %v47 = vld [vmem:[%s0] sm:$0xff]
    %v48 = vld [vmem:[%s0 + $0x8] sm:$0xff]
    %v49 = vld [vmem:[%s1] sm:$0xff]
    %v50 = vld [vmem:[%s1 + $0x8] sm:$0xff]
    %v51 = vld [vmem:[%s1 + $0x10] sm:$0xff]
    %v52 = vld [vmem:[%s1 + $0x18] sm:$0xff]
    %v53 = vld [vmem:[%s1 + $0x20] sm:$0xff]
    %v54 = vld [vmem:[%s1 + $0x28] sm:$0xff]
    %v55 = vld [vmem:[%s1 + $0x30] sm:$0xff]
    %v56 = vld [vmem:[%s1 + $0x38] sm:$0xff]
    %v57 = vld [vmem:[%s1 + $0x40] sm:$0xff]
    %v58 = vld [vmem:[%s1 + $0x48] sm:$0xff]
    %v59 = vld [vmem:[%s1 + $0x50] sm:$0xff]
    %v60 = vld [vmem:[%s1 + $0x58] sm:$0xff]
    %v61 = vld [vmem:[%s1 + $0x60] sm:$0xff]
    %v62 = vld [vmem:[%s1 + $0x68] sm:$0xff]
    %v63 = vld [vmem:[%s1 + $0x70] sm:$0xff]
    %v64 = vld [vmem:[%s1 + $0x78] sm:$0xff]
    %v65 = vld [vmem:[%s1 + $0x80] sm:$0xff]
    %v66 = vld [vmem:[%s1 + $0x88] sm:$0xff]
    %v67 = vld [vmem:[%s1 + $0x90] sm:$0xff]
    %v68 = vld [vmem:[%s1 + $0x98] sm:$0xff]
    %v69 = vld [vmem:[%s1 + $0xa0] sm:$0xff]
    %v70 = vld [vmem:[%s1 + $0xa8] sm:$0xff]
    %v71 = vld [vmem:[%s1 + $0xb0] sm:$0xff]
    %v72 = vld [vmem:[%s1 + $0xb8] sm:$0xff]
    %v73 = vld [vmem:[%s1 + $0xc0] sm:$0xff]
    %v74 = vld [vmem:[%s1 + $0xc8] sm:$0xff]
    %v75 = vld [vmem:[%s1 + $0xd0] sm:$0xff]
    %v76 = vld [vmem:[%s1 + $0xd8] sm:$0xff]
    %v77 = vld [vmem:[%s1 + $0xe0] sm:$0xff]
    %v78 = vld [vmem:[%s1 + $0xe8] sm:$0xff]
    %v79 = vld [vmem:[%s1 + $0xf0] sm:$0xff]
    %v80 = vld [vmem:[%s1 + $0xf8] sm:$0xff]
    %v81 = vld [vmem:[%s1 + $0x100] sm:$0xff]
    %v82 = vld [vmem:[%s1 + $0x108] sm:$0xff]
    %v83 = vld [vmem:[%s1 + $0x110] sm:$0xff]
    %v84 = vld [vmem:[%s1 + $0x118] sm:$0xff]
    %v85 = vld [vmem:[%s1 + $0x120] sm:$0xff]
    %v86 = vld [vmem:[%s1 + $0x128] sm:$0xff]
    %v87 = vld [vmem:[%s1 + $0x130] sm:$0xff]
    %v88 = vld [vmem:[%s1 + $0x138] sm:$0xff]
    %v89 = vld [vmem:[%s1 + $0x140] sm:$0xff]
    %v90 = vld [vmem:[%s1 + $0x148] sm:$0xff]
    %v91 = vld [vmem:[%s1 + $0x150] sm:$0xff]
    %v92 = vld [vmem:[%s1 + $0x158] sm:$0xff]
    %v93 = vld [vmem:[%s1 + $0x160] sm:$0xff]
    %v94 = vld [vmem:[%s1 + $0x168] sm:$0xff]
    %v95 = vld [vmem:[%s1 + $0x170] sm:$0xff]
    %v96 = vld [vmem:[%s1 + $0x178] sm:$0xff]
    %v97 = vld [vmem:[%s1 + $0x180] sm:$0xff]
    %v98 = vld [vmem:[%s1 + $0x188] sm:$0xff]
    %v99 = vld [vmem:[%s1 + $0x190] sm:$0xff]
    %v100 = vld [vmem:[%s1 + $0x198] sm:$0xff]
    %v101 = vld [vmem:[%s1 + $0x1a0] sm:$0xff]
    %v102 = vld [vmem:[%s1 + $0x1a8] sm:$0xff]
    %v103 = vld [vmem:[%s1 + $0x1b0] sm:$0xff]
    %v104 = vld [vmem:[%s1 + $0x1b8] sm:$0xff]
    %v105 = vld [vmem:[%s1 + $0x1c0] sm:$0xff]
    %v106 = vld [vmem:[%s1 + $0x1c8] sm:$0xff]
    %v107 = vld [vmem:[%s1 + $0x1d0] sm:$0xff]
    %v108 = vld [vmem:[%s1 + $0x1d8] sm:$0xff]
    %v109 = vld [vmem:[%s1 + $0x1e0] sm:$0xff]
    %v110 = vld [vmem:[%s1 + $0x1e8] sm:$0xff]
    %v111 = vld [vmem:[%s1 + $0x1f0] sm:$0xff]
    %v112 = vld [vmem:[%s1 + $0x1f8] sm:$0xff]
    %v113 = vld [vmem:[%s2] sm:$0xf]
    %v115 = vlaneseq
    %v116 = vshrl.u32 %v115, 7
    %v117 = vsub.s32 0, %v116
    %v118 = vrot.slane %v113, %v117
    %v119 = vlaneseq
    %v120 = vshrl.u32 %v119, 7
    %v121 = vsub.s32 1, %v120
    %v122 = vrot.slane %v113, %v121
    %v123 = vlaneseq
    %v124 = vshrl.u32 %v123, 7
    %v125 = vsub.s32 2, %v124
    %v126 = vrot.slane %v113, %v125
    %v127 = vlaneseq
    %v128 = vshrl.u32 %v127, 7
    %v129 = vsub.s32 3, %v128
    %v130 = vrot.slane %v113, %v129
    %135 = vmatprep.subr.mxu0 %v110
    %136 = vmatpush1.msra.mxu0 %v109
    %137 = vmatprep.subr.mxu0 %v106
    %138 = vmatpush1.msra.mxu0 %v105
    %139 = vmatprep.subr.mxu0 %v102
    %140 = vmatpush1.msra.mxu0 %v101
    %141 = vmatprep.subr.mxu0 %v98
    %142 = vmatpush1.msra.mxu0 %v97
    %143 = vmatprep.subr.mxu0 %v94
    %144 = vmatpush1.msra.mxu0 %v93
    %145 = vmatprep.subr.mxu0 %v90
    %146 = vmatpush1.msra.mxu0 %v89
    %147 = vmatprep.subr.mxu0 %v86
    %148 = vmatpush1.msra.mxu0 %v85
    %149 = vmatprep.subr.mxu0 %v82
    %150 = vmatpush1.msra.mxu0 %v81
    %151 = vmatprep.subr.mxu0 %v78
    %152 = vmatpush1.msra.mxu0 %v77
    %153 = vmatprep.subr.mxu0 %v74
    %154 = vmatpush1.msra.mxu0 %v73
    %155 = vmatprep.subr.mxu0 %v70
    %156 = vmatpush1.msra.mxu0 %v69
    %157 = vmatprep.subr.mxu0 %v66
    %158 = vmatpush1.msra.mxu0 %v65
    %159 = vmatprep.subr.mxu0 %v62
    %160 = vmatpush1.msra.mxu0 %v61
    %161 = vmatprep.subr.mxu0 %v58
    %162 = vmatpush1.msra.mxu0 %v57
    %163 = vmatprep.subr.mxu0 %v54
    %164 = vmatpush1.msra.mxu0 %v53
    %165 = vmatprep.subr.mxu0 %v50
    %166 = vmatpush1.msra.mxu0 %v49
    %167 = vmatprep.subr.mxu0 0.0
    %168 = vmatpush2.msra.mxu0 0.0
    %169 = vmatprep.subr.mxu0 0.0
    %170 = vmatpush2.msra.mxu0 0.0
    %171 = vmatprep.subr.mxu0 0.0
    %172 = vmatpush2.msra.mxu0 0.0
    %173 = vmatprep.subr.mxu0 0.0
    %174 = vmatpush2.msra.mxu0 0.0
    %175 = vmatprep.subr.mxu0 0.0
    %176 = vmatpush2.msra.mxu0 0.0
    %177 = vmatprep.subr.mxu0 0.0
    %178 = vmatpush2.msra.mxu0 0.0
    %179 = vmatprep.subr.mxu0 0.0
    %180 = vmatpush2.msra.mxu0 0.0
    %181 = vmatprep.subr.mxu0 0.0
    %182 = vmatpush2.msra.mxu0 0.0
    %183 = vmatprep.subr.mxu0 0.0
    %184 = vmatpush2.msra.mxu0 0.0
    %185 = vmatprep.subr.mxu0 0.0
    %186 = vmatpush2.msra.mxu0 0.0
    %187 = vmatprep.subr.mxu0 0.0
    %188 = vmatpush2.msra.mxu0 0.0
    %189 = vmatprep.subr.mxu0 0.0
    %190 = vmatpush2.msra.mxu0 0.0
    %191 = vmatprep.subr.mxu0 0.0
    %192 = vmatpush2.msra.mxu0 0.0
    %193 = vmatprep.subr.mxu0 0.0
    %194 = vmatpush2.msra.mxu0 0.0
    %195 = vmatprep.subr.mxu0 0.0
    %196 = vmatpush2.msra.mxu0 0.0
    %197 = vmatprep.subr.mxu0 0.0
    %198 = vmatpush2.msra.mxu0 0.0
    %199 = vmatprep.mubr.f32.mxu0 0.0
    %200 = vmatmul.mubr.f32.gmra.mxu0 %v47
    %v201 = vpop.f32.mrf.mxu0
    %v202 = vadd.f32 %v118, %v201
    %v203 = vpop.f32.mrf.mxu0
    %v204 = vadd.f32 %v122, %v203
    %205 = vmatprep.mubr.f32.mxu0 0.0
    %206 = vmatmul.mubr.f32.gmra.mxu0 %v48
    %v207 = vpop.f32.mrf.mxu0
    %v208 = vadd.f32 %v118, %v207
    %v209 = vpop.f32.mrf.mxu0
    %v210 = vadd.f32 %v122, %v209
    %211 = vdwg.mxu0
    %212 = vmatprep.subr.mxu0 %v112
    %213 = vmatpush1.msra.mxu0 %v111
    %214 = vmatprep.subr.mxu0 %v108
    %215 = vmatpush1.msra.mxu0 %v107
    %216 = vmatprep.subr.mxu0 %v104
    %217 = vmatpush1.msra.mxu0 %v103
    %218 = vmatprep.subr.mxu0 %v100
    %219 = vmatpush1.msra.mxu0 %v99
    %220 = vmatprep.subr.mxu0 %v96
    %221 = vmatpush1.msra.mxu0 %v95
    %222 = vmatprep.subr.mxu0 %v92
    %223 = vmatpush1.msra.mxu0 %v91
    %224 = vmatprep.subr.mxu0 %v88
    %225 = vmatpush1.msra.mxu0 %v87
    %226 = vmatprep.subr.mxu0 %v84
    %227 = vmatpush1.msra.mxu0 %v83
    %228 = vmatprep.subr.mxu0 %v80
    %229 = vmatpush1.msra.mxu0 %v79
    %230 = vmatprep.subr.mxu0 %v76
    %231 = vmatpush1.msra.mxu0 %v75
    %232 = vmatprep.subr.mxu0 %v72
    %233 = vmatpush1.msra.mxu0 %v71
    %234 = vmatprep.subr.mxu0 %v68
    %235 = vmatpush1.msra.mxu0 %v67
    %236 = vmatprep.subr.mxu0 %v64
    %237 = vmatpush1.msra.mxu0 %v63
    %238 = vmatprep.subr.mxu0 %v60
    %239 = vmatpush1.msra.mxu0 %v59
    %240 = vmatprep.subr.mxu0 %v56
    %241 = vmatpush1.msra.mxu0 %v55
    %242 = vmatprep.subr.mxu0 %v52
    %243 = vmatpush1.msra.mxu0 %v51
    %244 = vmatprep.subr.mxu0 0.0
    %245 = vmatpush2.msra.mxu0 0.0
    %246 = vmatprep.subr.mxu0 0.0
    %247 = vmatpush2.msra.mxu0 0.0
    %248 = vmatprep.subr.mxu0 0.0
    %249 = vmatpush2.msra.mxu0 0.0
    %250 = vmatprep.subr.mxu0 0.0
    %251 = vmatpush2.msra.mxu0 0.0
    %252 = vmatprep.subr.mxu0 0.0
    %253 = vmatpush2.msra.mxu0 0.0
    %254 = vmatprep.subr.mxu0 0.0
    %255 = vmatpush2.msra.mxu0 0.0
    %256 = vmatprep.subr.mxu0 0.0
    %257 = vmatpush2.msra.mxu0 0.0
    %258 = vmatprep.subr.mxu0 0.0
    %259 = vmatpush2.msra.mxu0 0.0
    %260 = vmatprep.subr.mxu0 0.0
    %261 = vmatpush2.msra.mxu0 0.0
    %262 = vmatprep.subr.mxu0 0.0
    %263 = vmatpush2.msra.mxu0 0.0
    %264 = vmatprep.subr.mxu0 0.0
    %265 = vmatpush2.msra.mxu0 0.0
    %266 = vmatprep.subr.mxu0 0.0
    %267 = vmatpush2.msra.mxu0 0.0
    %268 = vmatprep.subr.mxu0 0.0
    %269 = vmatpush2.msra.mxu0 0.0
    %270 = vmatprep.subr.mxu0 0.0
    %271 = vmatpush2.msra.mxu0 0.0
    %272 = vmatprep.subr.mxu0 0.0
    %273 = vmatpush2.msra.mxu0 0.0
    %274 = vmatprep.subr.mxu0 0.0
    %275 = vmatpush2.msra.mxu0 0.0
    %276 = vmatprep.mubr.f32.mxu0 0.0
    %277 = vmatmul.mubr.f32.gmra.mxu0 %v47
    %v278 = vpop.f32.mrf.mxu0
    %v279 = vadd.f32 %v126, %v278
    %v280 = vpop.f32.mrf.mxu0
    %v281 = vadd.f32 %v130, %v280
    %282 = vmatprep.mubr.f32.mxu0 0.0
    %283 = vmatmul.mubr.f32.gmra.mxu0 %v48
    %v284 = vpop.f32.mrf.mxu0
    %v285 = vadd.f32 %v126, %v284
    %v286 = vpop.f32.mrf.mxu0
    %v287 = vadd.f32 %v130, %v286
    %288 = vdwg.mxu0
    %v289 = vmax.f32 %v202, 0.0
    %v290 = vmax.f32 %v204, 0.0
    %v291 = vmax.f32 %v279, 0.0
    %v292 = vmax.f32 %v281, 0.0
    %v293 = vmax.f32 %v208, 0.0
    %v294 = vmax.f32 %v210, 0.0
    %v295 = vmax.f32 %v285, 0.0
    %v296 = vmax.f32 %v287, 0.0
    %v297 = vld [vmem:[%s3] sm:$0xff]
    %v298 = vld [vmem:[%s3 + $0x8] sm:$0xff]
    %v299 = vld [vmem:[%s3 + $0x10] sm:$0xff]
    %v300 = vld [vmem:[%s3 + $0x18] sm:$0xff]
    %v301 = vld [vmem:[%s3 + $0x20] sm:$0xff]
    %v302 = vld [vmem:[%s3 + $0x28] sm:$0xff]
    %v303 = vld [vmem:[%s3 + $0x30] sm:$0xff]
    %v304 = vld [vmem:[%s3 + $0x38] sm:$0xff]
    %v305 = vld [vmem:[%s3 + $0x40] sm:$0xff]
    %v306 = vld [vmem:[%s3 + $0x48] sm:$0xff]
    %v307 = vld [vmem:[%s3 + $0x50] sm:$0xff]
    %v308 = vld [vmem:[%s3 + $0x58] sm:$0xff]
    %v309 = vld [vmem:[%s3 + $0x60] sm:$0xff]
    %v310 = vld [vmem:[%s3 + $0x68] sm:$0xff]
    %v311 = vld [vmem:[%s3 + $0x70] sm:$0xff]
    %v312 = vld [vmem:[%s3 + $0x78] sm:$0xff]
    %v313 = vld [vmem:[%s3 + $0x80] sm:$0xff]
    %v314 = vld [vmem:[%s3 + $0x88] sm:$0xff]
    %v315 = vld [vmem:[%s3 + $0x90] sm:$0xff]
    %v316 = vld [vmem:[%s3 + $0x98] sm:$0xff]
    %v317 = vld [vmem:[%s3 + $0xa0] sm:$0xff]
    %v318 = vld [vmem:[%s3 + $0xa8] sm:$0xff]
    %v319 = vld [vmem:[%s3 + $0xb0] sm:$0xff]
    %v320 = vld [vmem:[%s3 + $0xb8] sm:$0xff]
    %v321 = vld [vmem:[%s3 + $0xc0] sm:$0xff]
    %v322 = vld [vmem:[%s3 + $0xc8] sm:$0xff]
    %v323 = vld [vmem:[%s3 + $0xd0] sm:$0xff]
    %v324 = vld [vmem:[%s3 + $0xd8] sm:$0xff]
    %v325 = vld [vmem:[%s3 + $0xe0] sm:$0xff]
    %v326 = vld [vmem:[%s3 + $0xe8] sm:$0xff]
    %v327 = vld [vmem:[%s3 + $0xf0] sm:$0xff]
    %v328 = vld [vmem:[%s3 + $0xf8] sm:$0xff]
    %v329 = vld [vmem:[%s3 + $0x100] sm:$0xff]
    %v330 = vld [vmem:[%s3 + $0x108] sm:$0xff]
    %v331 = vld [vmem:[%s3 + $0x110] sm:$0xff]
    %v332 = vld [vmem:[%s3 + $0x118] sm:$0xff]
    %v333 = vld [vmem:[%s3 + $0x120] sm:$0xff]
    %v334 = vld [vmem:[%s3 + $0x128] sm:$0xff]
    %v335 = vld [vmem:[%s3 + $0x130] sm:$0xff]
    %v336 = vld [vmem:[%s3 + $0x138] sm:$0xff]
    %v337 = vld [vmem:[%s3 + $0x140] sm:$0xff]
    %v338 = vld [vmem:[%s3 + $0x148] sm:$0xff]
    %v339 = vld [vmem:[%s3 + $0x150] sm:$0xff]
    %v340 = vld [vmem:[%s3 + $0x158] sm:$0xff]
    %v341 = vld [vmem:[%s3 + $0x160] sm:$0xff]
    %v342 = vld [vmem:[%s3 + $0x168] sm:$0xff]
    %v343 = vld [vmem:[%s3 + $0x170] sm:$0xff]
    %v344 = vld [vmem:[%s3 + $0x178] sm:$0xff]
    %v345 = vld [vmem:[%s3 + $0x180] sm:$0xff]
    %v346 = vld [vmem:[%s3 + $0x188] sm:$0xff]
    %v347 = vld [vmem:[%s3 + $0x190] sm:$0xff]
    %v348 = vld [vmem:[%s3 + $0x198] sm:$0xff]
    %v349 = vld [vmem:[%s3 + $0x1a0] sm:$0xff]
    %v350 = vld [vmem:[%s3 + $0x1a8] sm:$0xff]
    %v351 = vld [vmem:[%s3 + $0x1b0] sm:$0xff]
    %v352 = vld [vmem:[%s3 + $0x1b8] sm:$0xff]
    %v353 = vld [vmem:[%s3 + $0x1c0] sm:$0xff]
    %v354 = vld [vmem:[%s3 + $0x1c8] sm:$0xff]
    %v355 = vld [vmem:[%s3 + $0x1d0] sm:$0xff]
    %v356 = vld [vmem:[%s3 + $0x1d8] sm:$0xff]
    %v357 = vld [vmem:[%s3 + $0x1e0] sm:$0xff]
    %v358 = vld [vmem:[%s3 + $0x1e8] sm:$0xff]
    %v359 = vld [vmem:[%s3 + $0x1f0] sm:$0xff]
    %v360 = vld [vmem:[%s3 + $0x1f8] sm:$0xff]
    %v361 = vld [vmem:[%s3 + $0x200] sm:$0xff]
    %v362 = vld [vmem:[%s3 + $0x208] sm:$0xff]
    %v363 = vld [vmem:[%s3 + $0x210] sm:$0xff]
    %v364 = vld [vmem:[%s3 + $0x218] sm:$0xff]
    %v365 = vld [vmem:[%s3 + $0x220] sm:$0xff]
    %v366 = vld [vmem:[%s3 + $0x228] sm:$0xff]
    %v367 = vld [vmem:[%s3 + $0x230] sm:$0xff]
    %v368 = vld [vmem:[%s3 + $0x238] sm:$0xff]
    %v369 = vld [vmem:[%s3 + $0x240] sm:$0xff]
    %v370 = vld [vmem:[%s3 + $0x248] sm:$0xff]
    %v371 = vld [vmem:[%s3 + $0x250] sm:$0xff]
    %v372 = vld [vmem:[%s3 + $0x258] sm:$0xff]
    %v373 = vld [vmem:[%s3 + $0x260] sm:$0xff]
    %v374 = vld [vmem:[%s3 + $0x268] sm:$0xff]
    %v375 = vld [vmem:[%s3 + $0x270] sm:$0xff]
    %v376 = vld [vmem:[%s3 + $0x278] sm:$0xff]
    %v377 = vld [vmem:[%s3 + $0x280] sm:$0xff]
    %v378 = vld [vmem:[%s3 + $0x288] sm:$0xff]
    %v379 = vld [vmem:[%s3 + $0x290] sm:$0xff]
    %v380 = vld [vmem:[%s3 + $0x298] sm:$0xff]
    %v381 = vld [vmem:[%s3 + $0x2a0] sm:$0xff]
    %v382 = vld [vmem:[%s3 + $0x2a8] sm:$0xff]
    %v383 = vld [vmem:[%s3 + $0x2b0] sm:$0xff]
    %v384 = vld [vmem:[%s3 + $0x2b8] sm:$0xff]
    %v385 = vld [vmem:[%s3 + $0x2c0] sm:$0xff]
    %v386 = vld [vmem:[%s3 + $0x2c8] sm:$0xff]
    %v387 = vld [vmem:[%s3 + $0x2d0] sm:$0xff]
    %v388 = vld [vmem:[%s3 + $0x2d8] sm:$0xff]
    %v389 = vld [vmem:[%s3 + $0x2e0] sm:$0xff]
    %v390 = vld [vmem:[%s3 + $0x2e8] sm:$0xff]
    %v391 = vld [vmem:[%s3 + $0x2f0] sm:$0xff]
    %v392 = vld [vmem:[%s3 + $0x2f8] sm:$0xff]
    %v393 = vld [vmem:[%s3 + $0x300] sm:$0xff]
    %v394 = vld [vmem:[%s3 + $0x308] sm:$0xff]
    %v395 = vld [vmem:[%s3 + $0x310] sm:$0xff]
    %v396 = vld [vmem:[%s3 + $0x318] sm:$0xff]
    %v397 = vld [vmem:[%s3 + $0x320] sm:$0xff]
    %v398 = vld [vmem:[%s3 + $0x328] sm:$0xff]
    %v399 = vld [vmem:[%s3 + $0x330] sm:$0xff]
    %v400 = vld [vmem:[%s3 + $0x338] sm:$0xff]
    %v401 = vld [vmem:[%s3 + $0x340] sm:$0xff]
    %v402 = vld [vmem:[%s3 + $0x348] sm:$0xff]
    %v403 = vld [vmem:[%s3 + $0x350] sm:$0xff]
    %v404 = vld [vmem:[%s3 + $0x358] sm:$0xff]
    %v405 = vld [vmem:[%s3 + $0x360] sm:$0xff]
    %v406 = vld [vmem:[%s3 + $0x368] sm:$0xff]
    %v407 = vld [vmem:[%s3 + $0x370] sm:$0xff]
    %v408 = vld [vmem:[%s3 + $0x378] sm:$0xff]
    %v409 = vld [vmem:[%s3 + $0x380] sm:$0xff]
    %v410 = vld [vmem:[%s3 + $0x388] sm:$0xff]
    %v411 = vld [vmem:[%s3 + $0x390] sm:$0xff]
    %v412 = vld [vmem:[%s3 + $0x398] sm:$0xff]
    %v413 = vld [vmem:[%s3 + $0x3a0] sm:$0xff]
    %v414 = vld [vmem:[%s3 + $0x3a8] sm:$0xff]
    %v415 = vld [vmem:[%s3 + $0x3b0] sm:$0xff]
    %v416 = vld [vmem:[%s3 + $0x3b8] sm:$0xff]
    %v417 = vld [vmem:[%s3 + $0x3c0] sm:$0xff]
    %v418 = vld [vmem:[%s3 + $0x3c8] sm:$0xff]
    %v419 = vld [vmem:[%s3 + $0x3d0] sm:$0xff]
    %v420 = vld [vmem:[%s3 + $0x3d8] sm:$0xff]
    %v421 = vld [vmem:[%s3 + $0x3e0] sm:$0xff]
    %v422 = vld [vmem:[%s3 + $0x3e8] sm:$0xff]
    %v423 = vld [vmem:[%s3 + $0x3f0] sm:$0xff]
    %v424 = vld [vmem:[%s3 + $0x3f8] sm:$0xff]
    %v425 = vld [vmem:[%s3 + $0x400] sm:$0xff]
    %v426 = vld [vmem:[%s3 + $0x408] sm:$0xff]
    %v427 = vld [vmem:[%s3 + $0x410] sm:$0xff]
    %v428 = vld [vmem:[%s3 + $0x418] sm:$0xff]
    %v429 = vld [vmem:[%s3 + $0x420] sm:$0xff]
    %v430 = vld [vmem:[%s3 + $0x428] sm:$0xff]
    %v431 = vld [vmem:[%s3 + $0x430] sm:$0xff]
    %v432 = vld [vmem:[%s3 + $0x438] sm:$0xff]
    %v433 = vld [vmem:[%s3 + $0x440] sm:$0xff]
    %v434 = vld [vmem:[%s3 + $0x448] sm:$0xff]
    %v435 = vld [vmem:[%s3 + $0x450] sm:$0xff]
    %v436 = vld [vmem:[%s3 + $0x458] sm:$0xff]
    %v437 = vld [vmem:[%s3 + $0x460] sm:$0xff]
    %v438 = vld [vmem:[%s3 + $0x468] sm:$0xff]
    %v439 = vld [vmem:[%s3 + $0x470] sm:$0xff]
    %v440 = vld [vmem:[%s3 + $0x478] sm:$0xff]
    %v441 = vld [vmem:[%s3 + $0x480] sm:$0xff]
    %v442 = vld [vmem:[%s3 + $0x488] sm:$0xff]
    %v443 = vld [vmem:[%s3 + $0x490] sm:$0xff]
    %v444 = vld [vmem:[%s3 + $0x498] sm:$0xff]
    %v445 = vld [vmem:[%s3 + $0x4a0] sm:$0xff]
    %v446 = vld [vmem:[%s3 + $0x4a8] sm:$0xff]
    %v447 = vld [vmem:[%s3 + $0x4b0] sm:$0xff]
    %v448 = vld [vmem:[%s3 + $0x4b8] sm:$0xff]
    %v449 = vld [vmem:[%s3 + $0x4c0] sm:$0xff]
    %v450 = vld [vmem:[%s3 + $0x4c8] sm:$0xff]
    %v451 = vld [vmem:[%s3 + $0x4d0] sm:$0xff]
    %v452 = vld [vmem:[%s3 + $0x4d8] sm:$0xff]
    %v453 = vld [vmem:[%s3 + $0x4e0] sm:$0xff]
    %v454 = vld [vmem:[%s3 + $0x4e8] sm:$0xff]
    %v455 = vld [vmem:[%s3 + $0x4f0] sm:$0xff]
    %v456 = vld [vmem:[%s3 + $0x4f8] sm:$0xff]
    %v457 = vld [vmem:[%s3 + $0x500] sm:$0xff]
    %v458 = vld [vmem:[%s3 + $0x508] sm:$0xff]
    %v459 = vld [vmem:[%s3 + $0x510] sm:$0xff]
    %v460 = vld [vmem:[%s3 + $0x518] sm:$0xff]
    %v461 = vld [vmem:[%s3 + $0x520] sm:$0xff]
    %v462 = vld [vmem:[%s3 + $0x528] sm:$0xff]
    %v463 = vld [vmem:[%s3 + $0x530] sm:$0xff]
    %v464 = vld [vmem:[%s3 + $0x538] sm:$0xff]
    %v465 = vld [vmem:[%s3 + $0x540] sm:$0xff]
    %v466 = vld [vmem:[%s3 + $0x548] sm:$0xff]
    %v467 = vld [vmem:[%s3 + $0x550] sm:$0xff]
    %v468 = vld [vmem:[%s3 + $0x558] sm:$0xff]
    %v469 = vld [vmem:[%s3 + $0x560] sm:$0xff]
    %v470 = vld [vmem:[%s3 + $0x568] sm:$0xff]
    %v471 = vld [vmem:[%s3 + $0x570] sm:$0xff]
    %v472 = vld [vmem:[%s3 + $0x578] sm:$0xff]
    %v473 = vld [vmem:[%s3 + $0x580] sm:$0xff]
    %v474 = vld [vmem:[%s3 + $0x588] sm:$0xff]
    %v475 = vld [vmem:[%s3 + $0x590] sm:$0xff]
    %v476 = vld [vmem:[%s3 + $0x598] sm:$0xff]
    %v477 = vld [vmem:[%s3 + $0x5a0] sm:$0xff]
    %v478 = vld [vmem:[%s3 + $0x5a8] sm:$0xff]
    %v479 = vld [vmem:[%s3 + $0x5b0] sm:$0xff]
    %v480 = vld [vmem:[%s3 + $0x5b8] sm:$0xff]
    %v481 = vld [vmem:[%s3 + $0x5c0] sm:$0xff]
    %v482 = vld [vmem:[%s3 + $0x5c8] sm:$0xff]
    %v483 = vld [vmem:[%s3 + $0x5d0] sm:$0xff]
    %v484 = vld [vmem:[%s3 + $0x5d8] sm:$0xff]
    %v485 = vld [vmem:[%s3 + $0x5e0] sm:$0xff]
    %v486 = vld [vmem:[%s3 + $0x5e8] sm:$0xff]
    %v487 = vld [vmem:[%s3 + $0x5f0] sm:$0xff]
    %v488 = vld [vmem:[%s3 + $0x5f8] sm:$0xff]
    %v489 = vld [vmem:[%s3 + $0x600] sm:$0xff]
    %v490 = vld [vmem:[%s3 + $0x608] sm:$0xff]
    %v491 = vld [vmem:[%s3 + $0x610] sm:$0xff]
    %v492 = vld [vmem:[%s3 + $0x618] sm:$0xff]
    %v493 = vld [vmem:[%s3 + $0x620] sm:$0xff]
    %v494 = vld [vmem:[%s3 + $0x628] sm:$0xff]
    %v495 = vld [vmem:[%s3 + $0x630] sm:$0xff]
    %v496 = vld [vmem:[%s3 + $0x638] sm:$0xff]
    %v497 = vld [vmem:[%s3 + $0x640] sm:$0xff]
    %v498 = vld [vmem:[%s3 + $0x648] sm:$0xff]
    %v499 = vld [vmem:[%s3 + $0x650] sm:$0xff]
    %v500 = vld [vmem:[%s3 + $0x658] sm:$0xff]
    %v501 = vld [vmem:[%s3 + $0x660] sm:$0xff]
    %v502 = vld [vmem:[%s3 + $0x668] sm:$0xff]
    %v503 = vld [vmem:[%s3 + $0x670] sm:$0xff]
    %v504 = vld [vmem:[%s3 + $0x678] sm:$0xff]
    %v505 = vld [vmem:[%s3 + $0x680] sm:$0xff]
    %v506 = vld [vmem:[%s3 + $0x688] sm:$0xff]
    %v507 = vld [vmem:[%s3 + $0x690] sm:$0xff]
    %v508 = vld [vmem:[%s3 + $0x698] sm:$0xff]
    %v509 = vld [vmem:[%s3 + $0x6a0] sm:$0xff]
    %v510 = vld [vmem:[%s3 + $0x6a8] sm:$0xff]
    %v511 = vld [vmem:[%s3 + $0x6b0] sm:$0xff]
    %v512 = vld [vmem:[%s3 + $0x6b8] sm:$0xff]
    %v513 = vld [vmem:[%s3 + $0x6c0] sm:$0xff]
    %v514 = vld [vmem:[%s3 + $0x6c8] sm:$0xff]
    %v515 = vld [vmem:[%s3 + $0x6d0] sm:$0xff]
    %v516 = vld [vmem:[%s3 + $0x6d8] sm:$0xff]
    %v517 = vld [vmem:[%s3 + $0x6e0] sm:$0xff]
    %v518 = vld [vmem:[%s3 + $0x6e8] sm:$0xff]
    %v519 = vld [vmem:[%s3 + $0x6f0] sm:$0xff]
    %v520 = vld [vmem:[%s3 + $0x6f8] sm:$0xff]
    %v521 = vld [vmem:[%s3 + $0x700] sm:$0xff]
    %v522 = vld [vmem:[%s3 + $0x708] sm:$0xff]
    %v523 = vld [vmem:[%s3 + $0x710] sm:$0xff]
    %v524 = vld [vmem:[%s3 + $0x718] sm:$0xff]
    %v525 = vld [vmem:[%s3 + $0x720] sm:$0xff]
    %v526 = vld [vmem:[%s3 + $0x728] sm:$0xff]
    %v527 = vld [vmem:[%s3 + $0x730] sm:$0xff]
    %v528 = vld [vmem:[%s3 + $0x738] sm:$0xff]
    %v529 = vld [vmem:[%s3 + $0x740] sm:$0xff]
    %v530 = vld [vmem:[%s3 + $0x748] sm:$0xff]
    %v531 = vld [vmem:[%s3 + $0x750] sm:$0xff]
    %v532 = vld [vmem:[%s3 + $0x758] sm:$0xff]
    %v533 = vld [vmem:[%s3 + $0x760] sm:$0xff]
    %v534 = vld [vmem:[%s3 + $0x768] sm:$0xff]
    %v535 = vld [vmem:[%s3 + $0x770] sm:$0xff]
    %v536 = vld [vmem:[%s3 + $0x778] sm:$0xff]
    %v537 = vld [vmem:[%s3 + $0x780] sm:$0xff]
    %v538 = vld [vmem:[%s3 + $0x788] sm:$0xff]
    %v539 = vld [vmem:[%s3 + $0x790] sm:$0xff]
    %v540 = vld [vmem:[%s3 + $0x798] sm:$0xff]
    %v541 = vld [vmem:[%s3 + $0x7a0] sm:$0xff]
    %v542 = vld [vmem:[%s3 + $0x7a8] sm:$0xff]
    %v543 = vld [vmem:[%s3 + $0x7b0] sm:$0xff]
    %v544 = vld [vmem:[%s3 + $0x7b8] sm:$0xff]
    %v545 = vld [vmem:[%s3 + $0x7c0] sm:$0xff]
    %v546 = vld [vmem:[%s3 + $0x7c8] sm:$0xff]
    %v547 = vld [vmem:[%s3 + $0x7d0] sm:$0xff]
    %v548 = vld [vmem:[%s3 + $0x7d8] sm:$0xff]
    %v549 = vld [vmem:[%s3 + $0x7e0] sm:$0xff]
    %v550 = vld [vmem:[%s3 + $0x7e8] sm:$0xff]
    %v551 = vld [vmem:[%s3 + $0x7f0] sm:$0xff]
    %v552 = vld [vmem:[%s3 + $0x7f8] sm:$0xff]
    %v553 = vld [vmem:[%s4] sm:$0xf]
    %v555 = vlaneseq
    %v556 = vshrl.u32 %v555, 7
    %v557 = vsub.s32 0, %v556
    %v558 = vrot.slane %v553, %v557
    %v559 = vlaneseq
    %v560 = vshrl.u32 %v559, 7
    %v561 = vsub.s32 1, %v560
    %v562 = vrot.slane %v553, %v561
    %v563 = vlaneseq
    %v564 = vshrl.u32 %v563, 7
    %v565 = vsub.s32 2, %v564
    %v566 = vrot.slane %v553, %v565
    %v567 = vlaneseq
    %v568 = vshrl.u32 %v567, 7
    %v569 = vsub.s32 3, %v568
    %v570 = vrot.slane %v553, %v569
    %575 = vmatprep.subr.mxu0 %v358
    %576 = vmatpush1.msra.mxu0 %v357
    %577 = vmatprep.subr.mxu0 %v354
    %578 = vmatpush1.msra.mxu0 %v353
    %579 = vmatprep.subr.mxu0 %v350
    %580 = vmatpush1.msra.mxu0 %v349
    %581 = vmatprep.subr.mxu0 %v346
    %582 = vmatpush1.msra.mxu0 %v345
    %583 = vmatprep.subr.mxu0 %v342
    %584 = vmatpush1.msra.mxu0 %v341
    %585 = vmatprep.subr.mxu0 %v338
    %586 = vmatpush1.msra.mxu0 %v337
    %587 = vmatprep.subr.mxu0 %v334
    %588 = vmatpush1.msra.mxu0 %v333
    %589 = vmatprep.subr.mxu0 %v330
    %590 = vmatpush1.msra.mxu0 %v329
    %591 = vmatprep.subr.mxu0 %v326
    %592 = vmatpush1.msra.mxu0 %v325
    %593 = vmatprep.subr.mxu0 %v322
    %594 = vmatpush1.msra.mxu0 %v321
    %595 = vmatprep.subr.mxu0 %v318
    %596 = vmatpush1.msra.mxu0 %v317
    %597 = vmatprep.subr.mxu0 %v314
    %598 = vmatpush1.msra.mxu0 %v313
    %599 = vmatprep.subr.mxu0 %v310
    %600 = vmatpush1.msra.mxu0 %v309
    %601 = vmatprep.subr.mxu0 %v306
    %602 = vmatpush1.msra.mxu0 %v305
    %603 = vmatprep.subr.mxu0 %v302
    %604 = vmatpush1.msra.mxu0 %v301
    %605 = vmatprep.subr.mxu0 %v298
    %606 = vmatpush1.msra.mxu0 %v297
    %607 = vmatprep.subr.mxu0 %v422
    %608 = vmatpush2.msra.mxu0 %v421
    %609 = vmatprep.subr.mxu0 %v418
    %610 = vmatpush2.msra.mxu0 %v417
    %611 = vmatprep.subr.mxu0 %v414
    %612 = vmatpush2.msra.mxu0 %v413
    %613 = vmatprep.subr.mxu0 %v410
    %614 = vmatpush2.msra.mxu0 %v409
    %615 = vmatprep.subr.mxu0 %v406
    %616 = vmatpush2.msra.mxu0 %v405
    %617 = vmatprep.subr.mxu0 %v402
    %618 = vmatpush2.msra.mxu0 %v401
    %619 = vmatprep.subr.mxu0 %v398
    %620 = vmatpush2.msra.mxu0 %v397
    %621 = vmatprep.subr.mxu0 %v394
    %622 = vmatpush2.msra.mxu0 %v393
    %623 = vmatprep.subr.mxu0 %v390
    %624 = vmatpush2.msra.mxu0 %v389
    %625 = vmatprep.subr.mxu0 %v386
    %626 = vmatpush2.msra.mxu0 %v385
    %627 = vmatprep.subr.mxu0 %v382
    %628 = vmatpush2.msra.mxu0 %v381
    %629 = vmatprep.subr.mxu0 %v378
    %630 = vmatpush2.msra.mxu0 %v377
    %631 = vmatprep.subr.mxu0 %v374
    %632 = vmatpush2.msra.mxu0 %v373
    %633 = vmatprep.subr.mxu0 %v370
    %634 = vmatpush2.msra.mxu0 %v369
    %635 = vmatprep.subr.mxu0 %v366
    %636 = vmatpush2.msra.mxu0 %v365
    %637 = vmatprep.subr.mxu0 %v362
    %638 = vmatpush2.msra.mxu0 %v361
    %639 = vmatprep.mubr.f32.mxu0 %v290
    %640 = vmatmul.mubr.f32.gmra.mxu0 %v289
    %v641 = vpop.f32.mrf.mxu0
    %v642 = vadd.f32 %v558, %v641
    %v643 = vpop.f32.mrf.mxu0
    %v644 = vadd.f32 %v562, %v643
    %645 = vmatprep.mubr.f32.mxu0 %v294
    %646 = vmatmul.mubr.f32.gmra.mxu0 %v293
    %v647 = vpop.f32.mrf.mxu0
    %v648 = vadd.f32 %v558, %v647
    %v649 = vpop.f32.mrf.mxu0
    %v650 = vadd.f32 %v562, %v649
    %651 = vdwg.mxu0
    %652 = vmatprep.subr.mxu0 %v486
    %653 = vmatpush1.msra.mxu0 %v485
    %654 = vmatprep.subr.mxu0 %v482
    %655 = vmatpush1.msra.mxu0 %v481
    %656 = vmatprep.subr.mxu0 %v478
    %657 = vmatpush1.msra.mxu0 %v477
    %658 = vmatprep.subr.mxu0 %v474
    %659 = vmatpush1.msra.mxu0 %v473
    %660 = vmatprep.subr.mxu0 %v470
    %661 = vmatpush1.msra.mxu0 %v469
    %662 = vmatprep.subr.mxu0 %v466
    %663 = vmatpush1.msra.mxu0 %v465
    %664 = vmatprep.subr.mxu0 %v462
    %665 = vmatpush1.msra.mxu0 %v461
    %666 = vmatprep.subr.mxu0 %v458
    %667 = vmatpush1.msra.mxu0 %v457
    %668 = vmatprep.subr.mxu0 %v454
    %669 = vmatpush1.msra.mxu0 %v453
    %670 = vmatprep.subr.mxu0 %v450
    %671 = vmatpush1.msra.mxu0 %v449
    %672 = vmatprep.subr.mxu0 %v446
    %673 = vmatpush1.msra.mxu0 %v445
    %674 = vmatprep.subr.mxu0 %v442
    %675 = vmatpush1.msra.mxu0 %v441
    %676 = vmatprep.subr.mxu0 %v438
    %677 = vmatpush1.msra.mxu0 %v437
    %678 = vmatprep.subr.mxu0 %v434
    %679 = vmatpush1.msra.mxu0 %v433
    %680 = vmatprep.subr.mxu0 %v430
    %681 = vmatpush1.msra.mxu0 %v429
    %682 = vmatprep.subr.mxu0 %v426
    %683 = vmatpush1.msra.mxu0 %v425
    %684 = vmatprep.subr.mxu0 %v550
    %685 = vmatpush2.msra.mxu0 %v549
    %686 = vmatprep.subr.mxu0 %v546
    %687 = vmatpush2.msra.mxu0 %v545
    %688 = vmatprep.subr.mxu0 %v542
    %689 = vmatpush2.msra.mxu0 %v541
    %690 = vmatprep.subr.mxu0 %v538
    %691 = vmatpush2.msra.mxu0 %v537
    %692 = vmatprep.subr.mxu0 %v534
    %693 = vmatpush2.msra.mxu0 %v533
    %694 = vmatprep.subr.mxu0 %v530
    %695 = vmatpush2.msra.mxu0 %v529
    %696 = vmatprep.subr.mxu0 %v526
    %697 = vmatpush2.msra.mxu0 %v525
    %698 = vmatprep.subr.mxu0 %v522
    %699 = vmatpush2.msra.mxu0 %v521
    %700 = vmatprep.subr.mxu0 %v518
    %701 = vmatpush2.msra.mxu0 %v517
    %702 = vmatprep.subr.mxu0 %v514
    %703 = vmatpush2.msra.mxu0 %v513
    %704 = vmatprep.subr.mxu0 %v510
    %705 = vmatpush2.msra.mxu0 %v509
    %706 = vmatprep.subr.mxu0 %v506
    %707 = vmatpush2.msra.mxu0 %v505
    %708 = vmatprep.subr.mxu0 %v502
    %709 = vmatpush2.msra.mxu0 %v501
    %710 = vmatprep.subr.mxu0 %v498
    %711 = vmatpush2.msra.mxu0 %v497
    %712 = vmatprep.subr.mxu0 %v494
    %713 = vmatpush2.msra.mxu0 %v493
    %714 = vmatprep.subr.mxu0 %v490
    %715 = vmatpush2.msra.mxu0 %v489
    %716 = vmatprep.mubr.f32.mxu0 %v292
    %717 = vmatmul.mubr.f32.gmra.mxu0 %v291
    %v718 = vpop.f32.mrf.mxu0
    %v719 = vadd.f32 %v642, %v718
    %v720 = vpop.f32.mrf.mxu0
    %v721 = vadd.f32 %v644, %v720
    %722 = vmatprep.mubr.f32.mxu0 %v296
    %723 = vmatmul.mubr.f32.gmra.mxu0 %v295
    %v724 = vpop.f32.mrf.mxu0
    %v725 = vadd.f32 %v648, %v724
    %v726 = vpop.f32.mrf.mxu0
    %v727 = vadd.f32 %v650, %v726
    %728 = vdwg.mxu0
    %729 = vmatprep.subr.mxu0 %v360
    %730 = vmatpush1.msra.mxu0 %v359
    %731 = vmatprep.subr.mxu0 %v356
    %732 = vmatpush1.msra.mxu0 %v355
    %733 = vmatprep.subr.mxu0 %v352
    %734 = vmatpush1.msra.mxu0 %v351
    %735 = vmatprep.subr.mxu0 %v348
    %736 = vmatpush1.msra.mxu0 %v347
    %737 = vmatprep.subr.mxu0 %v344
    %738 = vmatpush1.msra.mxu0 %v343
    %739 = vmatprep.subr.mxu0 %v340
    %740 = vmatpush1.msra.mxu0 %v339
    %741 = vmatprep.subr.mxu0 %v336
    %742 = vmatpush1.msra.mxu0 %v335
    %743 = vmatprep.subr.mxu0 %v332
    %744 = vmatpush1.msra.mxu0 %v331
    %745 = vmatprep.subr.mxu0 %v328
    %746 = vmatpush1.msra.mxu0 %v327
    %747 = vmatprep.subr.mxu0 %v324
    %748 = vmatpush1.msra.mxu0 %v323
    %749 = vmatprep.subr.mxu0 %v320
    %750 = vmatpush1.msra.mxu0 %v319
    %751 = vmatprep.subr.mxu0 %v316
    %752 = vmatpush1.msra.mxu0 %v315
    %753 = vmatprep.subr.mxu0 %v312
    %754 = vmatpush1.msra.mxu0 %v311
    %755 = vmatprep.subr.mxu0 %v308
    %756 = vmatpush1.msra.mxu0 %v307
    %757 = vmatprep.subr.mxu0 %v304
    %758 = vmatpush1.msra.mxu0 %v303
    %759 = vmatprep.subr.mxu0 %v300
    %760 = vmatpush1.msra.mxu0 %v299
    %761 = vmatprep.subr.mxu0 %v424
    %762 = vmatpush2.msra.mxu0 %v423
    %763 = vmatprep.subr.mxu0 %v420
    %764 = vmatpush2.msra.mxu0 %v419
    %765 = vmatprep.subr.mxu0 %v416
    %766 = vmatpush2.msra.mxu0 %v415
    %767 = vmatprep.subr.mxu0 %v412
    %768 = vmatpush2.msra.mxu0 %v411
    %769 = vmatprep.subr.mxu0 %v408
    %770 = vmatpush2.msra.mxu0 %v407
    %771 = vmatprep.subr.mxu0 %v404
    %772 = vmatpush2.msra.mxu0 %v403
    %773 = vmatprep.subr.mxu0 %v400
    %774 = vmatpush2.msra.mxu0 %v399
    %775 = vmatprep.subr.mxu0 %v396
    %776 = vmatpush2.msra.mxu0 %v395
    %777 = vmatprep.subr.mxu0 %v392
    %778 = vmatpush2.msra.mxu0 %v391
    %779 = vmatprep.subr.mxu0 %v388
    %780 = vmatpush2.msra.mxu0 %v387
    %781 = vmatprep.subr.mxu0 %v384
    %782 = vmatpush2.msra.mxu0 %v383
    %783 = vmatprep.subr.mxu0 %v380
    %784 = vmatpush2.msra.mxu0 %v379
    %785 = vmatprep.subr.mxu0 %v376
    %786 = vmatpush2.msra.mxu0 %v375
    %787 = vmatprep.subr.mxu0 %v372
    %788 = vmatpush2.msra.mxu0 %v371
    %789 = vmatprep.subr.mxu0 %v368
    %790 = vmatpush2.msra.mxu0 %v367
    %791 = vmatprep.subr.mxu0 %v364
    %792 = vmatpush2.msra.mxu0 %v363
    %793 = vmatprep.mubr.f32.mxu0 %v290
    %794 = vmatmul.mubr.f32.gmra.mxu0 %v289
    %v795 = vpop.f32.mrf.mxu0
    %v796 = vadd.f32 %v566, %v795
    %v797 = vpop.f32.mrf.mxu0
    %v798 = vadd.f32 %v570, %v797
    %799 = vmatprep.mubr.f32.mxu0 %v294
    %800 = vmatmul.mubr.f32.gmra.mxu0 %v293
    %v801 = vpop.f32.mrf.mxu0
    %v802 = vadd.f32 %v566, %v801
    %v803 = vpop.f32.mrf.mxu0
    %v804 = vadd.f32 %v570, %v803
    %805 = vdwg.mxu0
    %806 = vmatprep.subr.mxu0 %v488
    %807 = vmatpush1.msra.mxu0 %v487
    %808 = vmatprep.subr.mxu0 %v484
    %809 = vmatpush1.msra.mxu0 %v483
    %810 = vmatprep.subr.mxu0 %v480
    %811 = vmatpush1.msra.mxu0 %v479
    %812 = vmatprep.subr.mxu0 %v476
    %813 = vmatpush1.msra.mxu0 %v475
    %814 = vmatprep.subr.mxu0 %v472
    %815 = vmatpush1.msra.mxu0 %v471
    %816 = vmatprep.subr.mxu0 %v468
    %817 = vmatpush1.msra.mxu0 %v467
    %818 = vmatprep.subr.mxu0 %v464
    %819 = vmatpush1.msra.mxu0 %v463
    %820 = vmatprep.subr.mxu0 %v460
    %821 = vmatpush1.msra.mxu0 %v459
    %822 = vmatprep.subr.mxu0 %v456
    %823 = vmatpush1.msra.mxu0 %v455
    %824 = vmatprep.subr.mxu0 %v452
    %825 = vmatpush1.msra.mxu0 %v451
    %826 = vmatprep.subr.mxu0 %v448
    %827 = vmatpush1.msra.mxu0 %v447
    %828 = vmatprep.subr.mxu0 %v444
    %829 = vmatpush1.msra.mxu0 %v443
    %830 = vmatprep.subr.mxu0 %v440
    %831 = vmatpush1.msra.mxu0 %v439
    %832 = vmatprep.subr.mxu0 %v436
    %833 = vmatpush1.msra.mxu0 %v435
    %834 = vmatprep.subr.mxu0 %v432
    %835 = vmatpush1.msra.mxu0 %v431
    %836 = vmatprep.subr.mxu0 %v428
    %837 = vmatpush1.msra.mxu0 %v427
    %838 = vmatprep.subr.mxu0 %v552
    %839 = vmatpush2.msra.mxu0 %v551
    %840 = vmatprep.subr.mxu0 %v548
    %841 = vmatpush2.msra.mxu0 %v547
    %842 = vmatprep.subr.mxu0 %v544
    %843 = vmatpush2.msra.mxu0 %v543
    %844 = vmatprep.subr.mxu0 %v540
    %845 = vmatpush2.msra.mxu0 %v539
    %846 = vmatprep.subr.mxu0 %v536
    %847 = vmatpush2.msra.mxu0 %v535
    %848 = vmatprep.subr.mxu0 %v532
    %849 = vmatpush2.msra.mxu0 %v531
    %850 = vmatprep.subr.mxu0 %v528
    %851 = vmatpush2.msra.mxu0 %v527
    %852 = vmatprep.subr.mxu0 %v524
    %853 = vmatpush2.msra.mxu0 %v523
    %854 = vmatprep.subr.mxu0 %v520
    %855 = vmatpush2.msra.mxu0 %v519
    %856 = vmatprep.subr.mxu0 %v516
    %857 = vmatpush2.msra.mxu0 %v515
    %858 = vmatprep.subr.mxu0 %v512
    %859 = vmatpush2.msra.mxu0 %v511
    %860 = vmatprep.subr.mxu0 %v508
    %861 = vmatpush2.msra.mxu0 %v507
    %862 = vmatprep.subr.mxu0 %v504
    %863 = vmatpush2.msra.mxu0 %v503
    %864 = vmatprep.subr.mxu0 %v500
    %865 = vmatpush2.msra.mxu0 %v499
    %866 = vmatprep.subr.mxu0 %v496
    %867 = vmatpush2.msra.mxu0 %v495
    %868 = vmatprep.subr.mxu0 %v492
    %869 = vmatpush2.msra.mxu0 %v491
    %870 = vmatprep.mubr.f32.mxu0 %v292
    %871 = vmatmul.mubr.f32.gmra.mxu0 %v291
    %v872 = vpop.f32.mrf.mxu0
    %v873 = vadd.f32 %v796, %v872
    %v874 = vpop.f32.mrf.mxu0
    %v875 = vadd.f32 %v798, %v874
    %876 = vmatprep.mubr.f32.mxu0 %v296
    %877 = vmatmul.mubr.f32.gmra.mxu0 %v295
    %v878 = vpop.f32.mrf.mxu0
    %v879 = vadd.f32 %v802, %v878
    %v880 = vpop.f32.mrf.mxu0
    %v881 = vadd.f32 %v804, %v880
    %882 = vdwg.mxu0
    %v883 = vmax.f32 %v719, 0.0
    %v884 = vmax.f32 %v721, 0.0
    %v885 = vmax.f32 %v873, 0.0
    %v886 = vmax.f32 %v875, 0.0
    %v887 = vmax.f32 %v725, 0.0
    %v888 = vmax.f32 %v727, 0.0
    %v889 = vmax.f32 %v879, 0.0
    %v890 = vmax.f32 %v881, 0.0
    %v891 = vld [vmem:[#allocation2] sm:$0xff]
    %v892 = vld [vmem:[#allocation2 + $0x8] sm:$0xff]
    %v893 = vld [vmem:[#allocation2 + $0x10] sm:$0xff]
    %v894 = vld [vmem:[#allocation2 + $0x18] sm:$0xff]
    %v895 = vld [vmem:[#allocation2 + $0x20] sm:$0xff]
    %v896 = vld [vmem:[#allocation2 + $0x28] sm:$0xff]
    %v897 = vld [vmem:[#allocation2 + $0x30] sm:$0xff]
    %v898 = vld [vmem:[#allocation2 + $0x38] sm:$0xff]
    %v899 = vld [vmem:[#allocation2 + $0x40] sm:$0xff]
    %v900 = vld [vmem:[#allocation2 + $0x48] sm:$0xff]
    %v901 = vld [vmem:[#allocation2 + $0x50] sm:$0xff]
    %v902 = vld [vmem:[#allocation2 + $0x58] sm:$0xff]
    %v903 = vld [vmem:[#allocation2 + $0x60] sm:$0xff]
    %v904 = vld [vmem:[#allocation2 + $0x68] sm:$0xff]
    %v905 = vld [vmem:[#allocation2 + $0x70] sm:$0xff]
    %v906 = vld [vmem:[#allocation2 + $0x78] sm:$0xff]
    %v907 = vld [vmem:[#allocation2 + $0x80] sm:$0xff]
    %v908 = vld [vmem:[#allocation2 + $0x88] sm:$0xff]
    %v909 = vld [vmem:[#allocation2 + $0x90] sm:$0xff]
    %v910 = vld [vmem:[#allocation2 + $0x98] sm:$0xff]
    %v911 = vld [vmem:[#allocation2 + $0xa0] sm:$0xff]
    %v912 = vld [vmem:[#allocation2 + $0xa8] sm:$0xff]
    %v913 = vld [vmem:[#allocation2 + $0xb0] sm:$0xff]
    %v914 = vld [vmem:[#allocation2 + $0xb8] sm:$0xff]
    %v915 = vld [vmem:[#allocation2 + $0xc0] sm:$0xff]
    %v916 = vld [vmem:[#allocation2 + $0xc8] sm:$0xff]
    %v917 = vld [vmem:[#allocation2 + $0xd0] sm:$0xff]
    %v918 = vld [vmem:[#allocation2 + $0xd8] sm:$0xff]
    %v919 = vld [vmem:[#allocation2 + $0xe0] sm:$0xff]
    %v920 = vld [vmem:[#allocation2 + $0xe8] sm:$0xff]
    %v921 = vld [vmem:[#allocation2 + $0xf0] sm:$0xff]
    %v922 = vld [vmem:[#allocation2 + $0xf8] sm:$0xff]
    %v923 = vld [vmem:[#allocation2 + $0x100] sm:$0xff]
    %v924 = vld [vmem:[#allocation2 + $0x108] sm:$0xff]
    %v925 = vld [vmem:[#allocation2 + $0x110] sm:$0xff]
    %v926 = vld [vmem:[#allocation2 + $0x118] sm:$0xff]
    %v927 = vld [vmem:[#allocation2 + $0x120] sm:$0xff]
    %v928 = vld [vmem:[#allocation2 + $0x128] sm:$0xff]
    %v929 = vld [vmem:[#allocation2 + $0x130] sm:$0xff]
    %v930 = vld [vmem:[#allocation2 + $0x138] sm:$0xff]
    %v931 = vld [vmem:[#allocation2 + $0x140] sm:$0xff]
    %v932 = vld [vmem:[#allocation2 + $0x148] sm:$0xff]
    %v933 = vld [vmem:[#allocation2 + $0x150] sm:$0xff]
    %v934 = vld [vmem:[#allocation2 + $0x158] sm:$0xff]
    %v935 = vld [vmem:[#allocation2 + $0x160] sm:$0xff]
    %v936 = vld [vmem:[#allocation2 + $0x168] sm:$0xff]
    %v937 = vld [vmem:[#allocation2 + $0x170] sm:$0xff]
    %v938 = vld [vmem:[#allocation2 + $0x178] sm:$0xff]
    %v939 = vld [vmem:[#allocation2 + $0x180] sm:$0xff]
    %v940 = vld [vmem:[#allocation2 + $0x188] sm:$0xff]
    %v941 = vld [vmem:[#allocation2 + $0x190] sm:$0xff]
    %v942 = vld [vmem:[#allocation2 + $0x198] sm:$0xff]
    %v943 = vld [vmem:[#allocation2 + $0x1a0] sm:$0xff]
    %v944 = vld [vmem:[#allocation2 + $0x1a8] sm:$0xff]
    %v945 = vld [vmem:[#allocation2 + $0x1b0] sm:$0xff]
    %v946 = vld [vmem:[#allocation2 + $0x1b8] sm:$0xff]
    %v947 = vld [vmem:[#allocation2 + $0x1c0] sm:$0xff]
    %v948 = vld [vmem:[#allocation2 + $0x1c8] sm:$0xff]
    %v949 = vld [vmem:[#allocation2 + $0x1d0] sm:$0xff]
    %v950 = vld [vmem:[#allocation2 + $0x1d8] sm:$0xff]
    %v951 = vld [vmem:[#allocation2 + $0x1e0] sm:$0xff]
    %v952 = vld [vmem:[#allocation2 + $0x1e8] sm:$0xff]
    %v953 = vld [vmem:[#allocation2 + $0x1f0] sm:$0xff]
    %v954 = vld [vmem:[#allocation2 + $0x1f8] sm:$0xff]
    %v955 = vld [vmem:[#allocation2 + $0x200] sm:$0xff]
    %v956 = vld [vmem:[#allocation2 + $0x208] sm:$0xff]
    %v957 = vld [vmem:[#allocation2 + $0x210] sm:$0xff]
    %v958 = vld [vmem:[#allocation2 + $0x218] sm:$0xff]
    %v959 = vld [vmem:[#allocation2 + $0x220] sm:$0xff]
    %v960 = vld [vmem:[#allocation2 + $0x228] sm:$0xff]
    %v961 = vld [vmem:[#allocation2 + $0x230] sm:$0xff]
    %v962 = vld [vmem:[#allocation2 + $0x238] sm:$0xff]
    %v963 = vld [vmem:[#allocation2 + $0x240] sm:$0xff]
    %v964 = vld [vmem:[#allocation2 + $0x248] sm:$0xff]
    %v965 = vld [vmem:[#allocation2 + $0x250] sm:$0xff]
    %v966 = vld [vmem:[#allocation2 + $0x258] sm:$0xff]
    %v967 = vld [vmem:[#allocation2 + $0x260] sm:$0xff]
    %v968 = vld [vmem:[#allocation2 + $0x268] sm:$0xff]
    %v969 = vld [vmem:[#allocation2 + $0x270] sm:$0xff]
    %v970 = vld [vmem:[#allocation2 + $0x278] sm:$0xff]
    %v971 = vld [vmem:[#allocation2 + $0x280] sm:$0xff]
    %v972 = vld [vmem:[#allocation2 + $0x288] sm:$0xff]
    %v973 = vld [vmem:[#allocation2 + $0x290] sm:$0xff]
    %v974 = vld [vmem:[#allocation2 + $0x298] sm:$0xff]
    %v975 = vld [vmem:[#allocation2 + $0x2a0] sm:$0xff]
    %v976 = vld [vmem:[#allocation2 + $0x2a8] sm:$0xff]
    %v977 = vld [vmem:[#allocation2 + $0x2b0] sm:$0xff]
    %v978 = vld [vmem:[#allocation2 + $0x2b8] sm:$0xff]
    %v979 = vld [vmem:[#allocation2 + $0x2c0] sm:$0xff]
    %v980 = vld [vmem:[#allocation2 + $0x2c8] sm:$0xff]
    %v981 = vld [vmem:[#allocation2 + $0x2d0] sm:$0xff]
    %v982 = vld [vmem:[#allocation2 + $0x2d8] sm:$0xff]
    %v983 = vld [vmem:[#allocation2 + $0x2e0] sm:$0xff]
    %v984 = vld [vmem:[#allocation2 + $0x2e8] sm:$0xff]
    %v985 = vld [vmem:[#allocation2 + $0x2f0] sm:$0xff]
    %v986 = vld [vmem:[#allocation2 + $0x2f8] sm:$0xff]
    %v987 = vld [vmem:[#allocation2 + $0x300] sm:$0xff]
    %v988 = vld [vmem:[#allocation2 + $0x308] sm:$0xff]
    %v989 = vld [vmem:[#allocation2 + $0x310] sm:$0xff]
    %v990 = vld [vmem:[#allocation2 + $0x318] sm:$0xff]
    %v991 = vld [vmem:[#allocation2 + $0x320] sm:$0xff]
    %v992 = vld [vmem:[#allocation2 + $0x328] sm:$0xff]
    %v993 = vld [vmem:[#allocation2 + $0x330] sm:$0xff]
    %v994 = vld [vmem:[#allocation2 + $0x338] sm:$0xff]
    %v995 = vld [vmem:[#allocation2 + $0x340] sm:$0xff]
    %v996 = vld [vmem:[#allocation2 + $0x348] sm:$0xff]
    %v997 = vld [vmem:[#allocation2 + $0x350] sm:$0xff]
    %v998 = vld [vmem:[#allocation2 + $0x358] sm:$0xff]
    %v999 = vld [vmem:[#allocation2 + $0x360] sm:$0xff]
    %v1000 = vld [vmem:[#allocation2 + $0x368] sm:$0xff]
    %v1001 = vld [vmem:[#allocation2 + $0x370] sm:$0xff]
    %v1002 = vld [vmem:[#allocation2 + $0x378] sm:$0xff]
    %v1003 = vld [vmem:[#allocation2 + $0x380] sm:$0xff]
    %v1004 = vld [vmem:[#allocation2 + $0x388] sm:$0xff]
    %v1005 = vld [vmem:[#allocation2 + $0x390] sm:$0xff]
    %v1006 = vld [vmem:[#allocation2 + $0x398] sm:$0xff]
    %v1007 = vld [vmem:[#allocation2 + $0x3a0] sm:$0xff]
    %v1008 = vld [vmem:[#allocation2 + $0x3a8] sm:$0xff]
    %v1009 = vld [vmem:[#allocation2 + $0x3b0] sm:$0xff]
    %v1010 = vld [vmem:[#allocation2 + $0x3b8] sm:$0xff]
    %v1011 = vld [vmem:[#allocation2 + $0x3c0] sm:$0xff]
    %v1012 = vld [vmem:[#allocation2 + $0x3c8] sm:$0xff]
    %v1013 = vld [vmem:[#allocation2 + $0x3d0] sm:$0xff]
    %v1014 = vld [vmem:[#allocation2 + $0x3d8] sm:$0xff]
    %v1015 = vld [vmem:[#allocation2 + $0x3e0] sm:$0xff]
    %v1016 = vld [vmem:[#allocation2 + $0x3e8] sm:$0xff]
    %v1017 = vld [vmem:[#allocation2 + $0x3f0] sm:$0xff]
    %v1018 = vld [vmem:[#allocation2 + $0x3f8] sm:$0xff]
    %v1019 = vld [vmem:[#allocation2 + $0x400] sm:$0xff]
    %v1020 = vld [vmem:[#allocation2 + $0x408] sm:$0xff]
    %v1021 = vld [vmem:[#allocation2 + $0x410] sm:$0xff]
    %v1022 = vld [vmem:[#allocation2 + $0x418] sm:$0xff]
    %v1023 = vld [vmem:[#allocation2 + $0x420] sm:$0xff]
    %v1024 = vld [vmem:[#allocation2 + $0x428] sm:$0xff]
    %v1025 = vld [vmem:[#allocation2 + $0x430] sm:$0xff]
    %v1026 = vld [vmem:[#allocation2 + $0x438] sm:$0xff]
    %v1027 = vld [vmem:[#allocation2 + $0x440] sm:$0xff]
    %v1028 = vld [vmem:[#allocation2 + $0x448] sm:$0xff]
    %v1029 = vld [vmem:[#allocation2 + $0x450] sm:$0xff]
    %v1030 = vld [vmem:[#allocation2 + $0x458] sm:$0xff]
    %v1031 = vld [vmem:[#allocation2 + $0x460] sm:$0xff]
    %v1032 = vld [vmem:[#allocation2 + $0x468] sm:$0xff]
    %v1033 = vld [vmem:[#allocation2 + $0x470] sm:$0xff]
    %v1034 = vld [vmem:[#allocation2 + $0x478] sm:$0xff]
    %v1035 = vld [vmem:[#allocation2 + $0x480] sm:$0xff]
    %v1036 = vld [vmem:[#allocation2 + $0x488] sm:$0xff]
    %v1037 = vld [vmem:[#allocation2 + $0x490] sm:$0xff]
    %v1038 = vld [vmem:[#allocation2 + $0x498] sm:$0xff]
    %v1039 = vld [vmem:[#allocation2 + $0x4a0] sm:$0xff]
    %v1040 = vld [vmem:[#allocation2 + $0x4a8] sm:$0xff]
    %v1041 = vld [vmem:[#allocation2 + $0x4b0] sm:$0xff]
    %v1042 = vld [vmem:[#allocation2 + $0x4b8] sm:$0xff]
    %v1043 = vld [vmem:[#allocation2 + $0x4c0] sm:$0xff]
    %v1044 = vld [vmem:[#allocation2 + $0x4c8] sm:$0xff]
    %v1045 = vld [vmem:[#allocation2 + $0x4d0] sm:$0xff]
    %v1046 = vld [vmem:[#allocation2 + $0x4d8] sm:$0xff]
    %v1047 = vld [vmem:[#allocation2 + $0x4e0] sm:$0xff]
    %v1048 = vld [vmem:[#allocation2 + $0x4e8] sm:$0xff]
    %v1049 = vld [vmem:[#allocation2 + $0x4f0] sm:$0xff]
    %v1050 = vld [vmem:[#allocation2 + $0x4f8] sm:$0xff]
    %v1051 = vld [vmem:[#allocation2 + $0x500] sm:$0xff]
    %v1052 = vld [vmem:[#allocation2 + $0x508] sm:$0xff]
    %v1053 = vld [vmem:[#allocation2 + $0x510] sm:$0xff]
    %v1054 = vld [vmem:[#allocation2 + $0x518] sm:$0xff]
    %v1055 = vld [vmem:[#allocation2 + $0x520] sm:$0xff]
    %v1056 = vld [vmem:[#allocation2 + $0x528] sm:$0xff]
    %v1057 = vld [vmem:[#allocation2 + $0x530] sm:$0xff]
    %v1058 = vld [vmem:[#allocation2 + $0x538] sm:$0xff]
    %v1059 = vld [vmem:[#allocation2 + $0x540] sm:$0xff]
    %v1060 = vld [vmem:[#allocation2 + $0x548] sm:$0xff]
    %v1061 = vld [vmem:[#allocation2 + $0x550] sm:$0xff]
    %v1062 = vld [vmem:[#allocation2 + $0x558] sm:$0xff]
    %v1063 = vld [vmem:[#allocation2 + $0x560] sm:$0xff]
    %v1064 = vld [vmem:[#allocation2 + $0x568] sm:$0xff]
    %v1065 = vld [vmem:[#allocation2 + $0x570] sm:$0xff]
    %v1066 = vld [vmem:[#allocation2 + $0x578] sm:$0xff]
    %v1067 = vld [vmem:[#allocation2 + $0x580] sm:$0xff]
    %v1068 = vld [vmem:[#allocation2 + $0x588] sm:$0xff]
    %v1069 = vld [vmem:[#allocation2 + $0x590] sm:$0xff]
    %v1070 = vld [vmem:[#allocation2 + $0x598] sm:$0xff]
    %v1071 = vld [vmem:[#allocation2 + $0x5a0] sm:$0xff]
    %v1072 = vld [vmem:[#allocation2 + $0x5a8] sm:$0xff]
    %v1073 = vld [vmem:[#allocation2 + $0x5b0] sm:$0xff]
    %v1074 = vld [vmem:[#allocation2 + $0x5b8] sm:$0xff]
    %v1075 = vld [vmem:[#allocation2 + $0x5c0] sm:$0xff]
    %v1076 = vld [vmem:[#allocation2 + $0x5c8] sm:$0xff]
    %v1077 = vld [vmem:[#allocation2 + $0x5d0] sm:$0xff]
    %v1078 = vld [vmem:[#allocation2 + $0x5d8] sm:$0xff]
    %v1079 = vld [vmem:[#allocation2 + $0x5e0] sm:$0xff]
    %v1080 = vld [vmem:[#allocation2 + $0x5e8] sm:$0xff]
    %v1081 = vld [vmem:[#allocation2 + $0x5f0] sm:$0xff]
    %v1082 = vld [vmem:[#allocation2 + $0x5f8] sm:$0xff]
    %v1083 = vld [vmem:[#allocation2 + $0x600] sm:$0xff]
    %v1084 = vld [vmem:[#allocation2 + $0x608] sm:$0xff]
    %v1085 = vld [vmem:[#allocation2 + $0x610] sm:$0xff]
    %v1086 = vld [vmem:[#allocation2 + $0x618] sm:$0xff]
    %v1087 = vld [vmem:[#allocation2 + $0x620] sm:$0xff]
    %v1088 = vld [vmem:[#allocation2 + $0x628] sm:$0xff]
    %v1089 = vld [vmem:[#allocation2 + $0x630] sm:$0xff]
    %v1090 = vld [vmem:[#allocation2 + $0x638] sm:$0xff]
    %v1091 = vld [vmem:[#allocation2 + $0x640] sm:$0xff]
    %v1092 = vld [vmem:[#allocation2 + $0x648] sm:$0xff]
    %v1093 = vld [vmem:[#allocation2 + $0x650] sm:$0xff]
    %v1094 = vld [vmem:[#allocation2 + $0x658] sm:$0xff]
    %v1095 = vld [vmem:[#allocation2 + $0x660] sm:$0xff]
    %v1096 = vld [vmem:[#allocation2 + $0x668] sm:$0xff]
    %v1097 = vld [vmem:[#allocation2 + $0x670] sm:$0xff]
    %v1098 = vld [vmem:[#allocation2 + $0x678] sm:$0xff]
    %v1099 = vld [vmem:[#allocation2 + $0x680] sm:$0xff]
    %v1100 = vld [vmem:[#allocation2 + $0x688] sm:$0xff]
    %v1101 = vld [vmem:[#allocation2 + $0x690] sm:$0xff]
    %v1102 = vld [vmem:[#allocation2 + $0x698] sm:$0xff]
    %v1103 = vld [vmem:[#allocation2 + $0x6a0] sm:$0xff]
    %v1104 = vld [vmem:[#allocation2 + $0x6a8] sm:$0xff]
    %v1105 = vld [vmem:[#allocation2 + $0x6b0] sm:$0xff]
    %v1106 = vld [vmem:[#allocation2 + $0x6b8] sm:$0xff]
    %v1107 = vld [vmem:[#allocation2 + $0x6c0] sm:$0xff]
    %v1108 = vld [vmem:[#allocation2 + $0x6c8] sm:$0xff]
    %v1109 = vld [vmem:[#allocation2 + $0x6d0] sm:$0xff]
    %v1110 = vld [vmem:[#allocation2 + $0x6d8] sm:$0xff]
    %v1111 = vld [vmem:[#allocation2 + $0x6e0] sm:$0xff]
    %v1112 = vld [vmem:[#allocation2 + $0x6e8] sm:$0xff]
    %v1113 = vld [vmem:[#allocation2 + $0x6f0] sm:$0xff]
    %v1114 = vld [vmem:[#allocation2 + $0x6f8] sm:$0xff]
    %v1115 = vld [vmem:[#allocation2 + $0x700] sm:$0xff]
    %v1116 = vld [vmem:[#allocation2 + $0x708] sm:$0xff]
    %v1117 = vld [vmem:[#allocation2 + $0x710] sm:$0xff]
    %v1118 = vld [vmem:[#allocation2 + $0x718] sm:$0xff]
    %v1119 = vld [vmem:[#allocation2 + $0x720] sm:$0xff]
    %v1120 = vld [vmem:[#allocation2 + $0x728] sm:$0xff]
    %v1121 = vld [vmem:[#allocation2 + $0x730] sm:$0xff]
    %v1122 = vld [vmem:[#allocation2 + $0x738] sm:$0xff]
    %v1123 = vld [vmem:[#allocation2 + $0x740] sm:$0xff]
    %v1124 = vld [vmem:[#allocation2 + $0x748] sm:$0xff]
    %v1125 = vld [vmem:[#allocation2 + $0x750] sm:$0xff]
    %v1126 = vld [vmem:[#allocation2 + $0x758] sm:$0xff]
    %v1127 = vld [vmem:[#allocation2 + $0x760] sm:$0xff]
    %v1128 = vld [vmem:[#allocation2 + $0x768] sm:$0xff]
    %v1129 = vld [vmem:[#allocation2 + $0x770] sm:$0xff]
    %v1130 = vld [vmem:[#allocation2 + $0x778] sm:$0xff]
    %v1131 = vld [vmem:[#allocation2 + $0x780] sm:$0xff]
    %v1132 = vld [vmem:[#allocation2 + $0x788] sm:$0xff]
    %v1133 = vld [vmem:[#allocation2 + $0x790] sm:$0xff]
    %v1134 = vld [vmem:[#allocation2 + $0x798] sm:$0xff]
    %v1135 = vld [vmem:[#allocation2 + $0x7a0] sm:$0xff]
    %v1136 = vld [vmem:[#allocation2 + $0x7a8] sm:$0xff]
    %v1137 = vld [vmem:[#allocation2 + $0x7b0] sm:$0xff]
    %v1138 = vld [vmem:[#allocation2 + $0x7b8] sm:$0xff]
    %v1139 = vld [vmem:[#allocation2 + $0x7c0] sm:$0xff]
    %v1140 = vld [vmem:[#allocation2 + $0x7c8] sm:$0xff]
    %v1141 = vld [vmem:[#allocation2 + $0x7d0] sm:$0xff]
    %v1142 = vld [vmem:[#allocation2 + $0x7d8] sm:$0xff]
    %v1143 = vld [vmem:[#allocation2 + $0x7e0] sm:$0xff]
    %v1144 = vld [vmem:[#allocation2 + $0x7e8] sm:$0xff]
    %v1145 = vld [vmem:[#allocation2 + $0x7f0] sm:$0xff]
    %v1146 = vld [vmem:[#allocation2 + $0x7f8] sm:$0xff]
    %v1147 = vld [vmem:[%s6] sm:$0xf]
    %v1149 = vlaneseq
    %v1150 = vshrl.u32 %v1149, 7
    %v1151 = vsub.s32 0, %v1150
    %v1152 = vrot.slane %v1147, %v1151
    %v1153 = vlaneseq
    %v1154 = vshrl.u32 %v1153, 7
    %v1155 = vsub.s32 1, %v1154
    %v1156 = vrot.slane %v1147, %v1155
    %v1157 = vlaneseq
    %v1158 = vshrl.u32 %v1157, 7
    %v1159 = vsub.s32 2, %v1158
    %v1160 = vrot.slane %v1147, %v1159
    %v1161 = vlaneseq
    %v1162 = vshrl.u32 %v1161, 7
    %v1163 = vsub.s32 3, %v1162
    %v1164 = vrot.slane %v1147, %v1163
    %1169 = vmatprep.subr.mxu0 %v952
    %1170 = vmatpush1.msra.mxu0 %v951
    %1171 = vmatprep.subr.mxu0 %v948
    %1172 = vmatpush1.msra.mxu0 %v947
    %1173 = vmatprep.subr.mxu0 %v944
    %1174 = vmatpush1.msra.mxu0 %v943
    %1175 = vmatprep.subr.mxu0 %v940
    %1176 = vmatpush1.msra.mxu0 %v939
    %1177 = vmatprep.subr.mxu0 %v936
    %1178 = vmatpush1.msra.mxu0 %v935
    %1179 = vmatprep.subr.mxu0 %v932
    %1180 = vmatpush1.msra.mxu0 %v931
    %1181 = vmatprep.subr.mxu0 %v928
    %1182 = vmatpush1.msra.mxu0 %v927
    %1183 = vmatprep.subr.mxu0 %v924
    %1184 = vmatpush1.msra.mxu0 %v923
    %1185 = vmatprep.subr.mxu0 %v920
    %1186 = vmatpush1.msra.mxu0 %v919
    %1187 = vmatprep.subr.mxu0 %v916
    %1188 = vmatpush1.msra.mxu0 %v915
    %1189 = vmatprep.subr.mxu0 %v912
    %1190 = vmatpush1.msra.mxu0 %v911
    %1191 = vmatprep.subr.mxu0 %v908
    %1192 = vmatpush1.msra.mxu0 %v907
    %1193 = vmatprep.subr.mxu0 %v904
    %1194 = vmatpush1.msra.mxu0 %v903
    %1195 = vmatprep.subr.mxu0 %v900
    %1196 = vmatpush1.msra.mxu0 %v899
    %1197 = vmatprep.subr.mxu0 %v896
    %1198 = vmatpush1.msra.mxu0 %v895
    %1199 = vmatprep.subr.mxu0 %v892
    %1200 = vmatpush1.msra.mxu0 %v891
    %1201 = vmatprep.subr.mxu0 %v1016
    %1202 = vmatpush2.msra.mxu0 %v1015
    %1203 = vmatprep.subr.mxu0 %v1012
    %1204 = vmatpush2.msra.mxu0 %v1011
    %1205 = vmatprep.subr.mxu0 %v1008
    %1206 = vmatpush2.msra.mxu0 %v1007
    %1207 = vmatprep.subr.mxu0 %v1004
    %1208 = vmatpush2.msra.mxu0 %v1003
    %1209 = vmatprep.subr.mxu0 %v1000
    %1210 = vmatpush2.msra.mxu0 %v999
    %1211 = vmatprep.subr.mxu0 %v996
    %1212 = vmatpush2.msra.mxu0 %v995
    %1213 = vmatprep.subr.mxu0 %v992
    %1214 = vmatpush2.msra.mxu0 %v991
    %1215 = vmatprep.subr.mxu0 %v988
    %1216 = vmatpush2.msra.mxu0 %v987
    %1217 = vmatprep.subr.mxu0 %v984
    %1218 = vmatpush2.msra.mxu0 %v983
    %1219 = vmatprep.subr.mxu0 %v980
    %1220 = vmatpush2.msra.mxu0 %v979
    %1221 = vmatprep.subr.mxu0 %v976
    %1222 = vmatpush2.msra.mxu0 %v975
    %1223 = vmatprep.subr.mxu0 %v972
    %1224 = vmatpush2.msra.mxu0 %v971
    %1225 = vmatprep.subr.mxu0 %v968
    %1226 = vmatpush2.msra.mxu0 %v967
    %1227 = vmatprep.subr.mxu0 %v964
    %1228 = vmatpush2.msra.mxu0 %v963
    %1229 = vmatprep.subr.mxu0 %v960
    %1230 = vmatpush2.msra.mxu0 %v959
    %1231 = vmatprep.subr.mxu0 %v956
    %1232 = vmatpush2.msra.mxu0 %v955
    %1233 = vmatprep.mubr.f32.mxu0 %v884
    %1234 = vmatmul.mubr.f32.gmra.mxu0 %v883
    %v1235 = vpop.f32.mrf.mxu0
    %v1236 = vadd.f32 %v1152, %v1235
    %v1237 = vpop.f32.mrf.mxu0
    %v1238 = vadd.f32 %v1156, %v1237
    %1239 = vmatprep.mubr.f32.mxu0 %v888
    %1240 = vmatmul.mubr.f32.gmra.mxu0 %v887
    %v1241 = vpop.f32.mrf.mxu0
    %v1242 = vadd.f32 %v1152, %v1241
    %v1243 = vpop.f32.mrf.mxu0
    %v1244 = vadd.f32 %v1156, %v1243
    %1245 = vdwg.mxu0
    %1246 = vmatprep.subr.mxu0 %v1080
    %1247 = vmatpush1.msra.mxu0 %v1079
    %1248 = vmatprep.subr.mxu0 %v1076
    %1249 = vmatpush1.msra.mxu0 %v1075
    %1250 = vmatprep.subr.mxu0 %v1072
    %1251 = vmatpush1.msra.mxu0 %v1071
    %1252 = vmatprep.subr.mxu0 %v1068
    %1253 = vmatpush1.msra.mxu0 %v1067
    %1254 = vmatprep.subr.mxu0 %v1064
    %1255 = vmatpush1.msra.mxu0 %v1063
    %1256 = vmatprep.subr.mxu0 %v1060
    %1257 = vmatpush1.msra.mxu0 %v1059
    %1258 = vmatprep.subr.mxu0 %v1056
    %1259 = vmatpush1.msra.mxu0 %v1055
    %1260 = vmatprep.subr.mxu0 %v1052
    %1261 = vmatpush1.msra.mxu0 %v1051
    %1262 = vmatprep.subr.mxu0 %v1048
    %1263 = vmatpush1.msra.mxu0 %v1047
    %1264 = vmatprep.subr.mxu0 %v1044
    %1265 = vmatpush1.msra.mxu0 %v1043
    %1266 = vmatprep.subr.mxu0 %v1040
    %1267 = vmatpush1.msra.mxu0 %v1039
    %1268 = vmatprep.subr.mxu0 %v1036
    %1269 = vmatpush1.msra.mxu0 %v1035
    %1270 = vmatprep.subr.mxu0 %v1032
    %1271 = vmatpush1.msra.mxu0 %v1031
    %1272 = vmatprep.subr.mxu0 %v1028
    %1273 = vmatpush1.msra.mxu0 %v1027
    %1274 = vmatprep.subr.mxu0 %v1024
    %1275 = vmatpush1.msra.mxu0 %v1023
    %1276 = vmatprep.subr.mxu0 %v1020
    %1277 = vmatpush1.msra.mxu0 %v1019
    %1278 = vmatprep.subr.mxu0 %v1144
    %1279 = vmatpush2.msra.mxu0 %v1143
    %1280 = vmatprep.subr.mxu0 %v1140
    %1281 = vmatpush2.msra.mxu0 %v1139
    %1282 = vmatprep.subr.mxu0 %v1136
    %1283 = vmatpush2.msra.mxu0 %v1135
    %1284 = vmatprep.subr.mxu0 %v1132
    %1285 = vmatpush2.msra.mxu0 %v1131
    %1286 = vmatprep.subr.mxu0 %v1128
    %1287 = vmatpush2.msra.mxu0 %v1127
    %1288 = vmatprep.subr.mxu0 %v1124
    %1289 = vmatpush2.msra.mxu0 %v1123
    %1290 = vmatprep.subr.mxu0 %v1120
    %1291 = vmatpush2.msra.mxu0 %v1119
    %1292 = vmatprep.subr.mxu0 %v1116
    %1293 = vmatpush2.msra.mxu0 %v1115
    %1294 = vmatprep.subr.mxu0 %v1112
    %1295 = vmatpush2.msra.mxu0 %v1111
    %1296 = vmatprep.subr.mxu0 %v1108
    %1297 = vmatpush2.msra.mxu0 %v1107
    %1298 = vmatprep.subr.mxu0 %v1104
    %1299 = vmatpush2.msra.mxu0 %v1103
    %1300 = vmatprep.subr.mxu0 %v1100
    %1301 = vmatpush2.msra.mxu0 %v1099
    %1302 = vmatprep.subr.mxu0 %v1096
    %1303 = vmatpush2.msra.mxu0 %v1095
    %1304 = vmatprep.subr.mxu0 %v1092
    %1305 = vmatpush2.msra.mxu0 %v1091
    %1306 = vmatprep.subr.mxu0 %v1088
    %1307 = vmatpush2.msra.mxu0 %v1087
    %1308 = vmatprep.subr.mxu0 %v1084
    %1309 = vmatpush2.msra.mxu0 %v1083
    %1310 = vmatprep.mubr.f32.mxu0 %v886
    %1311 = vmatmul.mubr.f32.gmra.mxu0 %v885
    %v1312 = vpop.f32.mrf.mxu0
    %v1313 = vadd.f32 %v1236, %v1312
    %v1314 = vpop.f32.mrf.mxu0
    %v1315 = vadd.f32 %v1238, %v1314
    %1316 = vmatprep.mubr.f32.mxu0 %v890
    %1317 = vmatmul.mubr.f32.gmra.mxu0 %v889
    %v1318 = vpop.f32.mrf.mxu0
    %v1319 = vadd.f32 %v1242, %v1318
    %v1320 = vpop.f32.mrf.mxu0
    %v1321 = vadd.f32 %v1244, %v1320
    %1322 = vdwg.mxu0
    %1323 = vmatprep.subr.mxu0 %v954
    %1324 = vmatpush1.msra.mxu0 %v953
    %1325 = vmatprep.subr.mxu0 %v950
    %1326 = vmatpush1.msra.mxu0 %v949
    %1327 = vmatprep.subr.mxu0 %v946
    %1328 = vmatpush1.msra.mxu0 %v945
    %1329 = vmatprep.subr.mxu0 %v942
    %1330 = vmatpush1.msra.mxu0 %v941
    %1331 = vmatprep.subr.mxu0 %v938
    %1332 = vmatpush1.msra.mxu0 %v937
    %1333 = vmatprep.subr.mxu0 %v934
    %1334 = vmatpush1.msra.mxu0 %v933
    %1335 = vmatprep.subr.mxu0 %v930
    %1336 = vmatpush1.msra.mxu0 %v929
    %1337 = vmatprep.subr.mxu0 %v926
    %1338 = vmatpush1.msra.mxu0 %v925
    %1339 = vmatprep.subr.mxu0 %v922
    %1340 = vmatpush1.msra.mxu0 %v921
    %1341 = vmatprep.subr.mxu0 %v918
    %1342 = vmatpush1.msra.mxu0 %v917
    %1343 = vmatprep.subr.mxu0 %v914
    %1344 = vmatpush1.msra.mxu0 %v913
    %1345 = vmatprep.subr.mxu0 %v910
    %1346 = vmatpush1.msra.mxu0 %v909
    %1347 = vmatprep.subr.mxu0 %v906
    %1348 = vmatpush1.msra.mxu0 %v905
    %1349 = vmatprep.subr.mxu0 %v902
    %1350 = vmatpush1.msra.mxu0 %v901
    %1351 = vmatprep.subr.mxu0 %v898
    %1352 = vmatpush1.msra.mxu0 %v897
    %1353 = vmatprep.subr.mxu0 %v894
    %1354 = vmatpush1.msra.mxu0 %v893
    %1355 = vmatprep.subr.mxu0 %v1018
    %1356 = vmatpush2.msra.mxu0 %v1017
    %1357 = vmatprep.subr.mxu0 %v1014
    %1358 = vmatpush2.msra.mxu0 %v1013
    %1359 = vmatprep.subr.mxu0 %v1010
    %1360 = vmatpush2.msra.mxu0 %v1009
    %1361 = vmatprep.subr.mxu0 %v1006
    %1362 = vmatpush2.msra.mxu0 %v1005
    %1363 = vmatprep.subr.mxu0 %v1002
    %1364 = vmatpush2.msra.mxu0 %v1001
    %1365 = vmatprep.subr.mxu0 %v998
    %1366 = vmatpush2.msra.mxu0 %v997
    %1367 = vmatprep.subr.mxu0 %v994
    %1368 = vmatpush2.msra.mxu0 %v993
    %1369 = vmatprep.subr.mxu0 %v990
    %1370 = vmatpush2.msra.mxu0 %v989
    %1371 = vmatprep.subr.mxu0 %v986
    %1372 = vmatpush2.msra.mxu0 %v985
    %1373 = vmatprep.subr.mxu0 %v982
    %1374 = vmatpush2.msra.mxu0 %v981
    %1375 = vmatprep.subr.mxu0 %v978
    %1376 = vmatpush2.msra.mxu0 %v977
    %1377 = vmatprep.subr.mxu0 %v974
    %1378 = vmatpush2.msra.mxu0 %v973
    %1379 = vmatprep.subr.mxu0 %v970
    %1380 = vmatpush2.msra.mxu0 %v969
    %1381 = vmatprep.subr.mxu0 %v966
    %1382 = vmatpush2.msra.mxu0 %v965
    %1383 = vmatprep.subr.mxu0 %v962
    %1384 = vmatpush2.msra.mxu0 %v961
    %1385 = vmatprep.subr.mxu0 %v958
    %1386 = vmatpush2.msra.mxu0 %v957
    %1387 = vmatprep.mubr.f32.mxu0 %v884
    %1388 = vmatmul.mubr.f32.gmra.mxu0 %v883
    %v1389 = vpop.f32.mrf.mxu0
    %v1390 = vadd.f32 %v1160, %v1389
    %v1391 = vpop.f32.mrf.mxu0
    %v1392 = vadd.f32 %v1164, %v1391
    %1393 = vmatprep.mubr.f32.mxu0 %v888
    %1394 = vmatmul.mubr.f32.gmra.mxu0 %v887
    %v1395 = vpop.f32.mrf.mxu0
    %v1396 = vadd.f32 %v1160, %v1395
    %v1397 = vpop.f32.mrf.mxu0
    %v1398 = vadd.f32 %v1164, %v1397
    %1399 = vdwg.mxu0
    %1400 = vmatprep.subr.mxu0 %v1082
    %1401 = vmatpush1.msra.mxu0 %v1081
    %1402 = vmatprep.subr.mxu0 %v1078
    %1403 = vmatpush1.msra.mxu0 %v1077
    %1404 = vmatprep.subr.mxu0 %v1074
    %1405 = vmatpush1.msra.mxu0 %v1073
    %1406 = vmatprep.subr.mxu0 %v1070
    %1407 = vmatpush1.msra.mxu0 %v1069
    %1408 = vmatprep.subr.mxu0 %v1066
    %1409 = vmatpush1.msra.mxu0 %v1065
    %1410 = vmatprep.subr.mxu0 %v1062
    %1411 = vmatpush1.msra.mxu0 %v1061
    %1412 = vmatprep.subr.mxu0 %v1058
    %1413 = vmatpush1.msra.mxu0 %v1057
    %1414 = vmatprep.subr.mxu0 %v1054
    %1415 = vmatpush1.msra.mxu0 %v1053
    %1416 = vmatprep.subr.mxu0 %v1050
    %1417 = vmatpush1.msra.mxu0 %v1049
    %1418 = vmatprep.subr.mxu0 %v1046
    %1419 = vmatpush1.msra.mxu0 %v1045
    %1420 = vmatprep.subr.mxu0 %v1042
    %1421 = vmatpush1.msra.mxu0 %v1041
    %1422 = vmatprep.subr.mxu0 %v1038
    %1423 = vmatpush1.msra.mxu0 %v1037
    %1424 = vmatprep.subr.mxu0 %v1034
    %1425 = vmatpush1.msra.mxu0 %v1033
    %1426 = vmatprep.subr.mxu0 %v1030
    %1427 = vmatpush1.msra.mxu0 %v1029
    %1428 = vmatprep.subr.mxu0 %v1026
    %1429 = vmatpush1.msra.mxu0 %v1025
    %1430 = vmatprep.subr.mxu0 %v1022
    %1431 = vmatpush1.msra.mxu0 %v1021
    %1432 = vmatprep.subr.mxu0 %v1146
    %1433 = vmatpush2.msra.mxu0 %v1145
    %1434 = vmatprep.subr.mxu0 %v1142
    %1435 = vmatpush2.msra.mxu0 %v1141
    %1436 = vmatprep.subr.mxu0 %v1138
    %1437 = vmatpush2.msra.mxu0 %v1137
    %1438 = vmatprep.subr.mxu0 %v1134
    %1439 = vmatpush2.msra.mxu0 %v1133
    %1440 = vmatprep.subr.mxu0 %v1130
    %1441 = vmatpush2.msra.mxu0 %v1129
    %1442 = vmatprep.subr.mxu0 %v1126
    %1443 = vmatpush2.msra.mxu0 %v1125
    %1444 = vmatprep.subr.mxu0 %v1122
    %1445 = vmatpush2.msra.mxu0 %v1121
    %1446 = vmatprep.subr.mxu0 %v1118
    %1447 = vmatpush2.msra.mxu0 %v1117
    %1448 = vmatprep.subr.mxu0 %v1114
    %1449 = vmatpush2.msra.mxu0 %v1113
    %1450 = vmatprep.subr.mxu0 %v1110
    %1451 = vmatpush2.msra.mxu0 %v1109
    %1452 = vmatprep.subr.mxu0 %v1106
    %1453 = vmatpush2.msra.mxu0 %v1105
    %1454 = vmatprep.subr.mxu0 %v1102
    %1455 = vmatpush2.msra.mxu0 %v1101
    %1456 = vmatprep.subr.mxu0 %v1098
    %1457 = vmatpush2.msra.mxu0 %v1097
    %1458 = vmatprep.subr.mxu0 %v1094
    %1459 = vmatpush2.msra.mxu0 %v1093
    %1460 = vmatprep.subr.mxu0 %v1090
    %1461 = vmatpush2.msra.mxu0 %v1089
    %1462 = vmatprep.subr.mxu0 %v1086
    %1463 = vmatpush2.msra.mxu0 %v1085
    %1464 = vmatprep.mubr.f32.mxu0 %v886
    %1465 = vmatmul.mubr.f32.gmra.mxu0 %v885
    %v1466 = vpop.f32.mrf.mxu0
    %v1467 = vadd.f32 %v1390, %v1466
    %v1468 = vpop.f32.mrf.mxu0
    %v1469 = vadd.f32 %v1392, %v1468
    %1470 = vmatprep.mubr.f32.mxu0 %v890
    %1471 = vmatmul.mubr.f32.gmra.mxu0 %v889
    %v1472 = vpop.f32.mrf.mxu0
    %v1473 = vadd.f32 %v1396, %v1472
    %v1474 = vpop.f32.mrf.mxu0
    %v1475 = vadd.f32 %v1398, %v1474
    %1476 = vdwg.mxu0
    %v1477 = vmax.f32 %v1313, 0.0
    %v1478 = vmax.f32 %v1315, 0.0
    %v1479 = vmax.f32 %v1467, 0.0
    %v1480 = vmax.f32 %v1469, 0.0
    %v1481 = vmax.f32 %v1319, 0.0
    %v1482 = vmax.f32 %v1321, 0.0
    %v1483 = vmax.f32 %v1473, 0.0
    %v1484 = vmax.f32 %v1475, 0.0
    %v1485 = vld [vmem:[%s7] sm:$0xff]
    %v1486 = vld [vmem:[%s7 + $0x8] sm:$0xff]
    %v1487 = vld [vmem:[%s7 + $0x10] sm:$0xff]
    %v1488 = vld [vmem:[%s7 + $0x18] sm:$0xff]
    %v1489 = vld [vmem:[%s7 + $0x20] sm:$0xff]
    %v1490 = vld [vmem:[%s7 + $0x28] sm:$0xff]
    %v1491 = vld [vmem:[%s7 + $0x30] sm:$0xff]
    %v1492 = vld [vmem:[%s7 + $0x38] sm:$0xff]
    %v1493 = vld [vmem:[%s7 + $0x40] sm:$0xff]
    %v1494 = vld [vmem:[%s7 + $0x48] sm:$0xff]
    %v1495 = vld [vmem:[%s7 + $0x50] sm:$0xff]
    %v1496 = vld [vmem:[%s7 + $0x58] sm:$0xff]
    %v1497 = vld [vmem:[%s7 + $0x60] sm:$0xff]
    %v1498 = vld [vmem:[%s7 + $0x68] sm:$0xff]
    %v1499 = vld [vmem:[%s7 + $0x70] sm:$0xff]
    %v1500 = vld [vmem:[%s7 + $0x78] sm:$0xff]
    %v1501 = vld [vmem:[%s7 + $0x80] sm:$0xff]
    %v1502 = vld [vmem:[%s7 + $0x88] sm:$0xff]
    %v1503 = vld [vmem:[%s7 + $0x90] sm:$0xff]
    %v1504 = vld [vmem:[%s7 + $0x98] sm:$0xff]
    %v1505 = vld [vmem:[%s7 + $0xa0] sm:$0xff]
    %v1506 = vld [vmem:[%s7 + $0xa8] sm:$0xff]
    %v1507 = vld [vmem:[%s7 + $0xb0] sm:$0xff]
    %v1508 = vld [vmem:[%s7 + $0xb8] sm:$0xff]
    %v1509 = vld [vmem:[%s7 + $0xc0] sm:$0xff]
    %v1510 = vld [vmem:[%s7 + $0xc8] sm:$0xff]
    %v1511 = vld [vmem:[%s7 + $0xd0] sm:$0xff]
    %v1512 = vld [vmem:[%s7 + $0xd8] sm:$0xff]
    %v1513 = vld [vmem:[%s7 + $0xe0] sm:$0xff]
    %v1514 = vld [vmem:[%s7 + $0xe8] sm:$0xff]
    %v1515 = vld [vmem:[%s7 + $0xf0] sm:$0xff]
    %v1516 = vld [vmem:[%s7 + $0xf8] sm:$0xff]
    %v1517 = vld [vmem:[%s7 + $0x100] sm:$0xff]
    %v1518 = vld [vmem:[%s7 + $0x108] sm:$0xff]
    %v1519 = vld [vmem:[%s7 + $0x110] sm:$0xff]
    %v1520 = vld [vmem:[%s7 + $0x118] sm:$0xff]
    %v1521 = vld [vmem:[%s7 + $0x120] sm:$0xff]
    %v1522 = vld [vmem:[%s7 + $0x128] sm:$0xff]
    %v1523 = vld [vmem:[%s7 + $0x130] sm:$0xff]
    %v1524 = vld [vmem:[%s7 + $0x138] sm:$0xff]
    %v1525 = vld [vmem:[%s7 + $0x140] sm:$0xff]
    %v1526 = vld [vmem:[%s7 + $0x148] sm:$0xff]
    %v1527 = vld [vmem:[%s7 + $0x150] sm:$0xff]
    %v1528 = vld [vmem:[%s7 + $0x158] sm:$0xff]
    %v1529 = vld [vmem:[%s7 + $0x160] sm:$0xff]
    %v1530 = vld [vmem:[%s7 + $0x168] sm:$0xff]
    %v1531 = vld [vmem:[%s7 + $0x170] sm:$0xff]
    %v1532 = vld [vmem:[%s7 + $0x178] sm:$0xff]
    %v1533 = vld [vmem:[%s7 + $0x180] sm:$0xff]
    %v1534 = vld [vmem:[%s7 + $0x188] sm:$0xff]
    %v1535 = vld [vmem:[%s7 + $0x190] sm:$0xff]
    %v1536 = vld [vmem:[%s7 + $0x198] sm:$0xff]
    %v1537 = vld [vmem:[%s7 + $0x1a0] sm:$0xff]
    %v1538 = vld [vmem:[%s7 + $0x1a8] sm:$0xff]
    %v1539 = vld [vmem:[%s7 + $0x1b0] sm:$0xff]
    %v1540 = vld [vmem:[%s7 + $0x1b8] sm:$0xff]
    %v1541 = vld [vmem:[%s7 + $0x1c0] sm:$0xff]
    %v1542 = vld [vmem:[%s7 + $0x1c8] sm:$0xff]
    %v1543 = vld [vmem:[%s7 + $0x1d0] sm:$0xff]
    %v1544 = vld [vmem:[%s7 + $0x1d8] sm:$0xff]
    %v1545 = vld [vmem:[%s7 + $0x1e0] sm:$0xff]
    %v1546 = vld [vmem:[%s7 + $0x1e8] sm:$0xff]
    %v1547 = vld [vmem:[%s7 + $0x1f0] sm:$0xff]
    %v1548 = vld [vmem:[%s7 + $0x1f8] sm:$0xff]
    %v1549 = vld [vmem:[%s8] sm:$0x1]
    %v1551 = vlaneseq
    %v1552 = vshrl.u32 %v1551, 7
    %v1553 = vsub.s32 0, %v1552
    %v1554 = vrot.slane %v1549, %v1553
    %1556 = vmatprep.subr.mxu0 0.0
    %1557 = vmatpush1.msra.mxu0 %v1500
    %1558 = vmatprep.subr.mxu0 0.0
    %1559 = vmatpush1.msra.mxu0 %v1499
    %1560 = vmatprep.subr.mxu0 0.0
    %1561 = vmatpush1.msra.mxu0 %v1498
    %1562 = vmatprep.subr.mxu0 0.0
    %1563 = vmatpush1.msra.mxu0 %v1497
    %1564 = vmatprep.subr.mxu0 0.0
    %1565 = vmatpush1.msra.mxu0 %v1496
    %1566 = vmatprep.subr.mxu0 0.0
    %1567 = vmatpush1.msra.mxu0 %v1495
    %1568 = vmatprep.subr.mxu0 0.0
    %1569 = vmatpush1.msra.mxu0 %v1494
    %1570 = vmatprep.subr.mxu0 0.0
    %1571 = vmatpush1.msra.mxu0 %v1493
    %1572 = vmatprep.subr.mxu0 0.0
    %1573 = vmatpush1.msra.mxu0 %v1492
    %1574 = vmatprep.subr.mxu0 0.0
    %1575 = vmatpush1.msra.mxu0 %v1491
    %1576 = vmatprep.subr.mxu0 0.0
    %1577 = vmatpush1.msra.mxu0 %v1490
    %1578 = vmatprep.subr.mxu0 0.0
    %1579 = vmatpush1.msra.mxu0 %v1489
    %1580 = vmatprep.subr.mxu0 0.0
    %1581 = vmatpush1.msra.mxu0 %v1488
    %1582 = vmatprep.subr.mxu0 0.0
    %1583 = vmatpush1.msra.mxu0 %v1487
    %1584 = vmatprep.subr.mxu0 0.0
    %1585 = vmatpush1.msra.mxu0 %v1486
    %1586 = vmatprep.subr.mxu0 0.0
    %1587 = vmatpush1.msra.mxu0 %v1485
    %1588 = vmatprep.subr.mxu0 0.0
    %1589 = vmatpush2.msra.mxu0 %v1516
    %1590 = vmatprep.subr.mxu0 0.0
    %1591 = vmatpush2.msra.mxu0 %v1515
    %1592 = vmatprep.subr.mxu0 0.0
    %1593 = vmatpush2.msra.mxu0 %v1514
    %1594 = vmatprep.subr.mxu0 0.0
    %1595 = vmatpush2.msra.mxu0 %v1513
    %1596 = vmatprep.subr.mxu0 0.0
    %1597 = vmatpush2.msra.mxu0 %v1512
    %1598 = vmatprep.subr.mxu0 0.0
    %1599 = vmatpush2.msra.mxu0 %v1511
    %1600 = vmatprep.subr.mxu0 0.0
    %1601 = vmatpush2.msra.mxu0 %v1510
    %1602 = vmatprep.subr.mxu0 0.0
    %1603 = vmatpush2.msra.mxu0 %v1509
    %1604 = vmatprep.subr.mxu0 0.0
    %1605 = vmatpush2.msra.mxu0 %v1508
    %1606 = vmatprep.subr.mxu0 0.0
    %1607 = vmatpush2.msra.mxu0 %v1507
    %1608 = vmatprep.subr.mxu0 0.0
    %1609 = vmatpush2.msra.mxu0 %v1506
    %1610 = vmatprep.subr.mxu0 0.0
    %1611 = vmatpush2.msra.mxu0 %v1505
    %1612 = vmatprep.subr.mxu0 0.0
    %1613 = vmatpush2.msra.mxu0 %v1504
    %1614 = vmatprep.subr.mxu0 0.0
    %1615 = vmatpush2.msra.mxu0 %v1503
    %1616 = vmatprep.subr.mxu0 0.0
    %1617 = vmatpush2.msra.mxu0 %v1502
    %1618 = vmatprep.subr.mxu0 0.0
    %1619 = vmatpush2.msra.mxu0 %v1501
    %1620 = vmatprep.mubr.f32.mxu0 %v1478
    %1621 = vmatmul.mubr.f32.gmra.mxu0 %v1477
    %v1622 = vpop.f32.mrf.mxu0
    %v1623 = vadd.f32 %v1554, %v1622
    %v1624 = vpop.f32.mrf.mxu0
    %1625 = vmatprep.mubr.f32.mxu0 %v1482
    %1626 = vmatmul.mubr.f32.gmra.mxu0 %v1481
    %v1627 = vpop.f32.mrf.mxu0
    %v1628 = vadd.f32 %v1554, %v1627
    %v1629 = vpop.f32.mrf.mxu0
    %1630 = vdwg.mxu0
    %1631 = vmatprep.subr.mxu0 0.0
    %1632 = vmatpush1.msra.mxu0 %v1532
    %1633 = vmatprep.subr.mxu0 0.0
    %1634 = vmatpush1.msra.mxu0 %v1531
    %1635 = vmatprep.subr.mxu0 0.0
    %1636 = vmatpush1.msra.mxu0 %v1530
    %1637 = vmatprep.subr.mxu0 0.0
    %1638 = vmatpush1.msra.mxu0 %v1529
    %1639 = vmatprep.subr.mxu0 0.0
    %1640 = vmatpush1.msra.mxu0 %v1528
    %1641 = vmatprep.subr.mxu0 0.0
    %1642 = vmatpush1.msra.mxu0 %v1527
    %1643 = vmatprep.subr.mxu0 0.0
    %1644 = vmatpush1.msra.mxu0 %v1526
    %1645 = vmatprep.subr.mxu0 0.0
    %1646 = vmatpush1.msra.mxu0 %v1525
    %1647 = vmatprep.subr.mxu0 0.0
    %1648 = vmatpush1.msra.mxu0 %v1524
    %1649 = vmatprep.subr.mxu0 0.0
    %1650 = vmatpush1.msra.mxu0 %v1523
    %1651 = vmatprep.subr.mxu0 0.0
    %1652 = vmatpush1.msra.mxu0 %v1522
    %1653 = vmatprep.subr.mxu0 0.0
    %1654 = vmatpush1.msra.mxu0 %v1521
    %1655 = vmatprep.subr.mxu0 0.0
    %1656 = vmatpush1.msra.mxu0 %v1520
    %1657 = vmatprep.subr.mxu0 0.0
    %1658 = vmatpush1.msra.mxu0 %v1519
    %1659 = vmatprep.subr.mxu0 0.0
    %1660 = vmatpush1.msra.mxu0 %v1518
    %1661 = vmatprep.subr.mxu0 0.0
    %1662 = vmatpush1.msra.mxu0 %v1517
    %1663 = vmatprep.subr.mxu0 0.0
    %1664 = vmatpush2.msra.mxu0 %v1548
    %1665 = vmatprep.subr.mxu0 0.0
    %1666 = vmatpush2.msra.mxu0 %v1547
    %1667 = vmatprep.subr.mxu0 0.0
    %1668 = vmatpush2.msra.mxu0 %v1546
    %1669 = vmatprep.subr.mxu0 0.0
    %1670 = vmatpush2.msra.mxu0 %v1545
    %1671 = vmatprep.subr.mxu0 0.0
    %1672 = vmatpush2.msra.mxu0 %v1544
    %1673 = vmatprep.subr.mxu0 0.0
    %1674 = vmatpush2.msra.mxu0 %v1543
    %1675 = vmatprep.subr.mxu0 0.0
    %1676 = vmatpush2.msra.mxu0 %v1542
    %1677 = vmatprep.subr.mxu0 0.0
    %1678 = vmatpush2.msra.mxu0 %v1541
    %1679 = vmatprep.subr.mxu0 0.0
    %1680 = vmatpush2.msra.mxu0 %v1540
    %1681 = vmatprep.subr.mxu0 0.0
    %1682 = vmatpush2.msra.mxu0 %v1539
    %1683 = vmatprep.subr.mxu0 0.0
    %1684 = vmatpush2.msra.mxu0 %v1538
    %1685 = vmatprep.subr.mxu0 0.0
    %1686 = vmatpush2.msra.mxu0 %v1537
    %1687 = vmatprep.subr.mxu0 0.0
    %1688 = vmatpush2.msra.mxu0 %v1536
    %1689 = vmatprep.subr.mxu0 0.0
    %1690 = vmatpush2.msra.mxu0 %v1535
    %1691 = vmatprep.subr.mxu0 0.0
    %1692 = vmatpush2.msra.mxu0 %v1534
    %1693 = vmatprep.subr.mxu0 0.0
    %1694 = vmatpush2.msra.mxu0 %v1533
    %1695 = vmatprep.mubr.f32.mxu0 %v1480
    %1696 = vmatmul.mubr.f32.gmra.mxu0 %v1479
    %v1697 = vpop.f32.mrf.mxu0
    %v1698 = vadd.f32 %v1623, %v1697
    %v1699 = vpop.f32.mrf.mxu0
    %1700 = vmatprep.mubr.f32.mxu0 %v1484
    %1701 = vmatmul.mubr.f32.gmra.mxu0 %v1483
    %v1702 = vpop.f32.mrf.mxu0
    %v1703 = vadd.f32 %v1628, %v1702
    %v1704 = vpop.f32.mrf.mxu0
    %1705 = vdwg.mxu0
    %1706 = vst [vmem:[#allocation5] sm:$0xff] %v1698
    %1707 = vst [vmem:[#allocation5 + $0x8] sm:$0xff] %v1703
    // Predicated region
    $region42: #{joint_encoder_forward.1} parent=1 // pred_check
      _
    $region43: #{joint_encoder_forward.1} parent=1 // pred_check_branch
      %1709 = sbr.rel (0) target = $region45
    $region44: #{joint_encoder_forward.1} parent=1 // pred_region
      %s1711 = ssub.s32 256, 256
      %1712 = vsyncadd [#allocation4], %s1711
      %s1713 = sshll.u32 [#allocation5], 4
      %s1714 = int_to_ptr.vmem [resolvable:$true] %s1713
      %1719 = dma.vmem_to_hbm [thread:$0]  %s1714, 256, %s9, [#allocation4], 128, 128, 8
    $region45: #{joint_encoder_forward.1} parent=1 // pred_fallthru
      _
    // Predicated region
    $region46: #{joint_encoder_forward.1} parent=1 // pred_check
      _
    $region47: #{joint_encoder_forward.1} parent=1 // pred_check_branch
      %1721 = sbr.rel (0) target = $region49
    $region48: #{joint_encoder_forward.1} parent=1 // pred_region
      %1722 = dma.done [#allocation4], 256
    $region49: #{joint_encoder_forward.1} parent=1 // pred_fallthru
      _
    %1723 = vsyncpa [#allocation3], 1
    %1724 = vsyncpa [#allocation4], 1

</llo_original>
